<compile_context>
chip_gen: v7x
topology: tpu7x:2x2x1
jax: 0.10.0
libtpu: 0.0.40
codegen_flags: <defaults>
</compile_context>

<pallas_src>
import jax
import jax.numpy as jnp
import numpy as np
from jax.experimental import pallas as pl
from jax.experimental.pallas import tpu as pltpu

EPS = 1e-5


def _down_block_kernel(x_ref, t1_ref, t2_ref, bn_ref, q_ref, shift_ref, s_ref,
                       p_ref, pooled_ref, pre_ref):
    half = pooled_ref.shape[1] // 2          # W2 * Cout lanes per pooled row

    bn = bn_ref[...]                         # (4, W*Cout): tiled g1, be1, g2, be2
    q = q_ref[...]                           # (W*Cout, W*Cout), pre-scaled by 1/M
    up_m = shift_ref[0]                      # (NH, NH): row r <- row r-1, 0 across image tops
    dn_m = shift_ref[1]                      # (NH, NH): row r <- row r+1, 0 across image bottoms
    vs_m = shift_ref[2]                      # (NH, NH): row r <- row r+1 (pool vertical shift)

    def conv_bn_relu(a, t_ref, gamma_t, beta_t):
        # a: (N*H, W*Cin_local) lane-dense.  3x3 SAME conv = 3 vertical-tap
        # matmuls against block-Toeplitz weights; H padding / image boundaries
        # handled by the 0/1 row-shift matrices (no padded copy, no concat).
        a_up = jnp.dot(up_m, a, preferred_element_type=jnp.float32)   # row h-1
        a_dn = jnp.dot(dn_m, a, preferred_element_type=jnp.float32)   # row h+1
        y = jnp.dot(a_up, t_ref[0], preferred_element_type=jnp.float32)
        y = y + jnp.dot(a, t_ref[1], preferred_element_type=jnp.float32)
        y = y + jnp.dot(a_dn, t_ref[2], preferred_element_type=jnp.float32)
        # (conv bias omitted: cancelled exactly by training-mode BN mean-sub)
        # BatchNorm2d (training mode), one-pass stats.  The Q matmul reduces
        # the column sums over the W lane-blocks per channel AND broadcasts the
        # per-channel means back to the tiled (1, W*Cout) lane layout.
        col = jnp.concatenate([jnp.sum(y, axis=0, keepdims=True),
                               jnp.sum(y * y, axis=0, keepdims=True)], axis=0)
        tiled = jnp.dot(col, q, preferred_element_type=jnp.float32)   # (2, W*Cout)
        mean_t = tiled[0:1, :]
        var_t = tiled[1:2, :] - mean_t * mean_t
        scale_t = jax.lax.rsqrt(var_t + EPS) * gamma_t                # fold gamma
        return jnp.maximum((y - mean_t) * scale_t + beta_t, 0.0)      # ReLU

    # ----- ConvBlock 1 / ConvBlock 2 -----
    y1 = conv_bn_relu(x_ref[...], t1_ref, bn[0:1, :], bn[1:2, :])     # (N*H, W*Cout)
    y2 = conv_bn_relu(y1, t2_ref, bn[2:3, :], bn[3:4, :])             # (N*H, W*Cout)

    pre_ref[...] = y2                                                 # lane-dense pre-pool

    # ----- MaxPool2d(2, 2), all in registers, lane-dense -----
    # Horizontal pair-max: two 0/1 lane-compaction matmuls (even / odd width
    # blocks), each duplicating the compacted W2*Cout lanes into both halves.
    hcomp = jnp.maximum(jnp.dot(y2, s_ref[0], preferred_element_type=jnp.float32),
                        jnp.dot(y2, s_ref[1], preferred_element_type=jnp.float32))
    # Vertical pair-max: row-shift matmul + max (valid at even rows).
    vmax = jnp.maximum(hcomp, jnp.dot(vs_m, hcomp, preferred_element_type=jnp.float32))
    # Fold pooled rows (2r, 2r+1) into one 128-lane output row via two 0/1
    # row-selection matmuls + a lane select.
    left = jnp.dot(p_ref[0], vmax, preferred_element_type=jnp.float32)   # pooled rows 2r
    right = jnp.dot(p_ref[1], vmax, preferred_element_type=jnp.float32)  # pooled rows 2r+1
    lane = jax.lax.broadcasted_iota(jnp.int32, left.shape, 1)
    pooled_ref[...] = jnp.where(lane < half, left, right)


def _make_toeplitz(w_hwio, W):
    """(3, 3, Cin, Cout) HWIO conv weights -> (3, W*Cin, W*Cout) block-Toeplitz.

    One matrix per vertical tap kh; the horizontal taps and zero SAME-padding
    along W are folded into the banded block structure.
    """
    mats = []
    for kh in range(3):
        t = None
        for kw in range(3):
            band = np.eye(W, k=-(kw - 1), dtype=np.float32)   # [wi,wo]=1 iff wi-wo == kw-1
            term = jnp.kron(jnp.asarray(band), w_hwio[kh, kw].astype(jnp.float32))
            t = term if t is None else t + term
        mats.append(t)
    return jnp.stack(mats)                                     # (3, W*Cin, W*Cout)


def down_block(x_nchw, params):
    """params = (w1, b1, g1, be1, w2, b2, g2, be2); weights HWIO, vectors (1, Cout).

    Conv biases b1/b2 are accepted for API compatibility but unused: with
    training-mode BatchNorm right after the conv they cancel exactly.
    """
    w1, b1, g1, be1, w2, b2, g2, be2 = params
    del b1, b2
    N, Cin, H, W = x_nchw.shape
    Cout = w1.shape[-1]
    assert H % 2 == 0 and W % 2 == 0, "MaxPool2d(2,2) path assumes even H and W"
    H2, W2 = H // 2, W // 2
    NH = N * H
    assert (N * H2) % 2 == 0, "pooled-row folding needs an even number of pooled rows"
    NHF = (N * H2) // 2
    M = N * H * W
    half = W2 * Cout

    # Lane-dense input: NCHW -> NHWC -> (N*H, W*Cin).
    x = jnp.transpose(x_nchw, (0, 2, 3, 1)).astype(jnp.float32).reshape(NH, W * Cin)

    # Block-Toeplitz conv weights (im2col concat eliminated).
    t1 = _make_toeplitz(w1, W)                                 # (3, W*Cin,  W*Cout)
    t2 = _make_toeplitz(w2, W)                                 # (3, W*Cout, W*Cout)

    # BN affine params pre-tiled to the lane-dense width (lane = w*Cout + c).
    bn = jnp.concatenate(
        [jnp.tile(v.reshape(1, Cout).astype(jnp.float32), (1, W))
         for v in (g1, be1, g2, be2)], axis=0)                 # (4, W*Cout)

    # --- constant 0/1 shuffle matrices (numpy, built once at trace time) ---
    lane = np.arange(W * Cout)
    q = (lane[:, None] % Cout == lane[None, :] % Cout).astype(np.float32) / float(M)

    shifts = np.zeros((3, NH, NH), np.float32)
    r = np.arange(NH)
    up_rows = r[r % H != 0]
    dn_rows = r[r % H != H - 1]
    shifts[0, up_rows, up_rows - 1] = 1.0      # conv "up" tap: row r <- r-1
    shifts[1, dn_rows, dn_rows + 1] = 1.0      # conv "down" tap: row r <- r+1
    shifts[2, r[:-1], r[:-1] + 1] = 1.0        # pool vertical shift: row r <- r+1

    s_mats = np.zeros((2, W * Cout, 2 * half), np.float32)
    for b in range(W2):
        for c in range(Cout):
            s_mats[0, (2 * b) * Cout + c, b * Cout + c] = 1.0
            s_mats[0, (2 * b) * Cout + c, half + b * Cout + c] = 1.0
            s_mats[1, (2 * b + 1) * Cout + c, b * Cout + c] = 1.0
            s_mats[1, (2 * b + 1) * Cout + c, half + b * Cout + c] = 1.0

    p_mats = np.zeros((2, NHF, NH), np.float32)
    rr = np.arange(NHF)
    p_mats[0, rr, 4 * rr] = 1.0                # pooled rows 2r   (lanes [0:half))
    p_mats[1, rr, 4 * rr + 2] = 1.0            # pooled rows 2r+1 (lanes [half:2*half))

    pooled2d, pre2d = pl.pallas_call(
        _down_block_kernel,
        out_shape=(
            jax.ShapeDtypeStruct((NHF, 2 * half), jnp.float32),    # pooled, 128-lane rows
            jax.ShapeDtypeStruct((NH, W * Cout), jnp.float32),     # pre-pool, 128-lane rows
        ),
        in_specs=[pl.BlockSpec(memory_space=pltpu.MemorySpace.VMEM)] * 8,
        out_specs=(pl.BlockSpec(memory_space=pltpu.MemorySpace.VMEM),
                   pl.BlockSpec(memory_space=pltpu.MemorySpace.VMEM)),
        compiler_params=pltpu.CompilerParams(vmem_limit_bytes=32 * 1024 * 1024),
    )(x, t1, t2, bn, jnp.asarray(q), jnp.asarray(shifts), jnp.asarray(s_mats),
      jnp.asarray(p_mats))

    # Undo the lane folds in the wrapper (tiny XLA reshapes/transposes).
    pooled = pooled2d.reshape(NHF, 2, W2, Cout).reshape(N, H2, W2, Cout)
    pooled = jnp.transpose(pooled, (0, 3, 1, 2))                   # -> NCHW
    pre = jnp.transpose(pre2d.reshape(N, H, W, Cout), (0, 3, 1, 2))
    return pooled, pre


# ----------------------------- pure-JAX reference -----------------------------
def _ref_conv_block(x, w, b, g, be):
    y = jax.lax.conv_general_dilated(
        x, w, window_strides=(1, 1), padding="SAME",
        dimension_numbers=("NHWC", "HWIO", "NHWC"))
    y = y + b.reshape(1, 1, 1, -1)
    mean = jnp.mean(y, axis=(0, 1, 2), keepdims=True)
    var = jnp.mean((y - mean) ** 2, axis=(0, 1, 2), keepdims=True)
    y = (y - mean) * jax.lax.rsqrt(var + EPS) * g.reshape(1, 1, 1, -1) + be.reshape(1, 1, 1, -1)
    return jnp.maximum(y, 0.0)


def _ref_down_block(x_nchw, params):
    w1, b1, g1, be1, w2, b2, g2, be2 = params
    x = jnp.transpose(x_nchw, (0, 2, 3, 1)).astype(jnp.float32)
    y1 = _ref_conv_block(x, w1, b1, g1, be1)
    y2 = _ref_conv_block(y1, w2, b2, g2, be2)
    pooled = jax.lax.reduce_window(
        y2, -jnp.inf, jax.lax.max,
        window_dimensions=(1, 2, 2, 1), window_strides=(1, 2, 2, 1), padding="VALID")
    return (jnp.transpose(pooled, (0, 3, 1, 2)), jnp.transpose(y2, (0, 3, 1, 2)))


if __name__ == "__main__":
    N, Cin, Cout, H, W = 2, 4, 8, 16, 16

    key = jax.random.PRNGKey(0)
    ks = jax.random.split(key, 9)
    x = jax.random.normal(ks[0], (N, Cin, H, W), dtype=jnp.float32)      # NCHW like PyTorch

    # Deterministic synthetic parameters (shapes follow nn.Conv2d / nn.BatchNorm2d).
    w1 = 0.1 * jax.random.normal(ks[1], (3, 3, Cin, Cout), dtype=jnp.float32)   # HWIO
    b1 = 0.1 * jax.random.normal(ks[2], (1, Cout), dtype=jnp.float32)
    g1 = 1.0 + 0.1 * jax.random.normal(ks[3], (1, Cout), dtype=jnp.float32)
    be1 = 0.1 * jax.random.normal(ks[4], (1, Cout), dtype=jnp.float32)
    w2 = 0.1 * jax.random.normal(ks[5], (3, 3, Cout, Cout), dtype=jnp.float32)
    b2 = 0.1 * jax.random.normal(ks[6], (1, Cout), dtype=jnp.float32)
    g2 = 1.0 + 0.1 * jax.random.normal(ks[7], (1, Cout), dtype=jnp.float32)
    be2 = 0.1 * jax.random.normal(ks[8], (1, Cout), dtype=jnp.float32)
    params = (w1, b1, g1, be1, w2, b2, g2, be2)

    pooled, pre = jax.block_until_ready(down_block(x, params))
    pooled_ref, pre_ref = jax.block_until_ready(_ref_down_block(x, params))

    assert pooled.shape == (N, Cout, H // 2, W // 2)
    assert pre.shape == (N, Cout, H, W)
    np.testing.assert_allclose(np.asarray(pre), np.asarray(pre_ref), rtol=2e-2, atol=2e-2)
    np.testing.assert_allclose(np.asarray(pooled), np.asarray(pooled_ref), rtol=2e-2, atol=2e-2)

    print("KERNEL_OK")
</pallas_src>

<mosaic_0001>
module attributes {stable_mosaic.version = 11 : i64} {
  func.func @_down_block_kernel(%arg0: memref<32x64xf32, #tpu.memory_space<vmem>>, %arg1: memref<3x64x128xf32, #tpu.memory_space<vmem>>, %arg2: memref<3x128x128xf32, #tpu.memory_space<vmem>>, %arg3: memref<4x128xf32, #tpu.memory_space<vmem>>, %arg4: memref<128x128xf32, #tpu.memory_space<vmem>>, %arg5: memref<3x32x32xf32, #tpu.memory_space<vmem>>, %arg6: memref<2x128x128xf32, #tpu.memory_space<vmem>>, %arg7: memref<2x8x32xf32, #tpu.memory_space<vmem>>, %arg8: memref<8x128xf32, #tpu.memory_space<vmem>>, %arg9: memref<32x128xf32, #tpu.memory_space<vmem>>) attributes {dimension_semantics = [], scalar_prefetch = 0 : i64, scratch_operands = 0 : i64, tpu.core_type = #tpu.core_type<tc>} {
    %c0 = arith.constant 0 : index
    %c0_0 = arith.constant 0 : index
    %0 = vector.load %arg3[%c0, %c0_0] : memref<4x128xf32, #tpu.memory_space<vmem>>, vector<4x128xf32>
    %c0_1 = arith.constant 0 : index
    %c0_2 = arith.constant 0 : index
    %1 = vector.load %arg4[%c0_1, %c0_2] : memref<128x128xf32, #tpu.memory_space<vmem>>, vector<128x128xf32>
    %c0_3 = arith.constant 0 : index
    %c0_4 = arith.constant 0 : index
    %c0_5 = arith.constant 0 : index
    %2 = vector.load %arg5[%c0_3, %c0_4, %c0_5] : memref<3x32x32xf32, #tpu.memory_space<vmem>>, vector<1x32x32xf32>
    %3 = vector.shape_cast %2 : vector<1x32x32xf32> to vector<32x32xf32>
    %c1 = arith.constant 1 : index
    %c0_6 = arith.constant 0 : index
    %c0_7 = arith.constant 0 : index
    %4 = vector.load %arg5[%c1, %c0_6, %c0_7] : memref<3x32x32xf32, #tpu.memory_space<vmem>>, vector<1x32x32xf32>
    %5 = vector.shape_cast %4 : vector<1x32x32xf32> to vector<32x32xf32>
    %c2 = arith.constant 2 : index
    %c0_8 = arith.constant 0 : index
    %c0_9 = arith.constant 0 : index
    %6 = vector.load %arg5[%c2, %c0_8, %c0_9] : memref<3x32x32xf32, #tpu.memory_space<vmem>>, vector<1x32x32xf32>
    %7 = vector.shape_cast %6 : vector<1x32x32xf32> to vector<32x32xf32>
    %c0_10 = arith.constant 0 : index
    %c0_11 = arith.constant 0 : index
    %8 = vector.load %arg0[%c0_10, %c0_11] : memref<32x64xf32, #tpu.memory_space<vmem>>, vector<32x64xf32>
    %9 = vector.extract_strided_slice %0 {offsets = [0, 0], sizes = [1, 128], strides = [1, 1]} : vector<4x128xf32> to vector<1x128xf32>
    %10 = vector.extract_strided_slice %0 {offsets = [1, 0], sizes = [1, 128], strides = [1, 1]} : vector<4x128xf32> to vector<1x128xf32>
    %cst = arith.constant dense<0.000000e+00> : vector<32x64xf32>
    %11 = tpu.matmul %3, %8, %cst {dimension_numbers = #tpu.dot_dimension_numbers<[1], [0], [0], [1], [0, 0, 1, 1], [], []>} : vector<32x32xf32>, vector<32x64xf32>, vector<32x64xf32> -> vector<32x64xf32>
    %cst_12 = arith.constant dense<0.000000e+00> : vector<32x64xf32>
    %12 = tpu.matmul %5, %8, %cst_12 {dimension_numbers = #tpu.dot_dimension_numbers<[1], [0], [0], [1], [0, 0, 1, 1], [], []>} : vector<32x32xf32>, vector<32x64xf32>, vector<32x64xf32> -> vector<32x64xf32>
    %c0_13 = arith.constant 0 : index
    %c0_14 = arith.constant 0 : index
    %c0_15 = arith.constant 0 : index
    %13 = vector.load %arg1[%c0_13, %c0_14, %c0_15] : memref<3x64x128xf32, #tpu.memory_space<vmem>>, vector<1x64x128xf32>
    %14 = vector.shape_cast %13 : vector<1x64x128xf32> to vector<64x128xf32>
    %cst_16 = arith.constant dense<0.000000e+00> : vector<32x128xf32>
    %15 = tpu.matmul %11, %14, %cst_16 {dimension_numbers = #tpu.dot_dimension_numbers<[1], [0], [0], [1], [0, 0, 1, 1], [], []>} : vector<32x64xf32>, vector<64x128xf32>, vector<32x128xf32> -> vector<32x128xf32>
    %c1_17 = arith.constant 1 : index
    %c0_18 = arith.constant 0 : index
    %c0_19 = arith.constant 0 : index
    %16 = vector.load %arg1[%c1_17, %c0_18, %c0_19] : memref<3x64x128xf32, #tpu.memory_space<vmem>>, vector<1x64x128xf32>
    %17 = vector.shape_cast %16 : vector<1x64x128xf32> to vector<64x128xf32>
    %cst_20 = arith.constant dense<0.000000e+00> : vector<32x128xf32>
    %18 = tpu.matmul %8, %17, %cst_20 {dimension_numbers = #tpu.dot_dimension_numbers<[1], [0], [0], [1], [0, 0, 1, 1], [], []>} : vector<32x64xf32>, vector<64x128xf32>, vector<32x128xf32> -> vector<32x128xf32>
    %19 = arith.addf %15, %18 : vector<32x128xf32>
    %c2_21 = arith.constant 2 : index
    %c0_22 = arith.constant 0 : index
    %c0_23 = arith.constant 0 : index
    %20 = vector.load %arg1[%c2_21, %c0_22, %c0_23] : memref<3x64x128xf32, #tpu.memory_space<vmem>>, vector<1x64x128xf32>
    %21 = vector.shape_cast %20 : vector<1x64x128xf32> to vector<64x128xf32>
    %cst_24 = arith.constant dense<0.000000e+00> : vector<32x128xf32>
    %22 = tpu.matmul %12, %21, %cst_24 {dimension_numbers = #tpu.dot_dimension_numbers<[1], [0], [0], [1], [0, 0, 1, 1], [], []>} : vector<32x64xf32>, vector<64x128xf32>, vector<32x128xf32> -> vector<32x128xf32>
    %23 = arith.addf %19, %22 : vector<32x128xf32>
    %cst_25 = arith.constant dense<0.000000e+00> : vector<128xf32>
    %24 = vector.multi_reduction <add>, %23, %cst_25 [0] : vector<32x128xf32> to vector<128xf32>
    %25 = vector.shape_cast %24 : vector<128xf32> to vector<1x128xf32>
    %26 = arith.mulf %23, %23 : vector<32x128xf32>
    %cst_26 = arith.constant dense<0.000000e+00> : vector<128xf32>
    %27 = vector.multi_reduction <add>, %26, %cst_26 [0] : vector<32x128xf32> to vector<128xf32>
    %28 = vector.shape_cast %27 : vector<128xf32> to vector<1x128xf32>
    %29 = tpu.concatenate %25, %28 in 0 : vector<1x128xf32>, vector<1x128xf32> -> vector<2x128xf32>
    %cst_27 = arith.constant dense<0.000000e+00> : vector<2x128xf32>
    %30 = tpu.matmul %29, %1, %cst_27 {dimension_numbers = #tpu.dot_dimension_numbers<[1], [0], [0], [1], [0, 0, 1, 1], [], []>} : vector<2x128xf32>, vector<128x128xf32>, vector<2x128xf32> -> vector<2x128xf32>
    %31 = vector.extract_strided_slice %30 {offsets = [0, 0], sizes = [1, 128], strides = [1, 1]} : vector<2x128xf32> to vector<1x128xf32>
    %32 = vector.extract_strided_slice %30 {offsets = [1, 0], sizes = [1, 128], strides = [1, 1]} : vector<2x128xf32> to vector<1x128xf32>
    %33 = arith.mulf %31, %31 : vector<1x128xf32>
    %34 = arith.subf %32, %33 : vector<1x128xf32>
    %cst_28 = arith.constant 9.99999974E-6 : f32
    %35 = vector.broadcast %cst_28 : f32 to vector<1x128xf32>
    %36 = arith.addf %34, %35 : vector<1x128xf32>
    %37 = math.rsqrt %36 : vector<1x128xf32>
    %38 = arith.mulf %37, %9 : vector<1x128xf32>
    %39 = vector.broadcast %31 : vector<1x128xf32> to vector<32x128xf32>
    %40 = arith.subf %23, %39 : vector<32x128xf32>
    %41 = vector.broadcast %38 : vector<1x128xf32> to vector<32x128xf32>
    %42 = arith.mulf %40, %41 : vector<32x128xf32>
    %43 = vector.broadcast %10 : vector<1x128xf32> to vector<32x128xf32>
    %44 = arith.addf %42, %43 : vector<32x128xf32>
    %cst_29 = arith.constant 0.000000e+00 : f32
    %45 = vector.broadcast %cst_29 : f32 to vector<32x128xf32>
    %46 = arith.maximumf %44, %45 : vector<32x128xf32>
    %47 = vector.extract_strided_slice %0 {offsets = [2, 0], sizes = [1, 128], strides = [1, 1]} : vector<4x128xf32> to vector<1x128xf32>
    %48 = vector.extract_strided_slice %0 {offsets = [3, 0], sizes = [1, 128], strides = [1, 1]} : vector<4x128xf32> to vector<1x128xf32>
    %cst_30 = arith.constant dense<0.000000e+00> : vector<32x128xf32>
    %49 = tpu.matmul %3, %46, %cst_30 {dimension_numbers = #tpu.dot_dimension_numbers<[1], [0], [0], [1], [0, 0, 1, 1], [], []>} : vector<32x32xf32>, vector<32x128xf32>, vector<32x128xf32> -> vector<32x128xf32>
    %cst_31 = arith.constant dense<0.000000e+00> : vector<32x128xf32>
    %50 = tpu.matmul %5, %46, %cst_31 {dimension_numbers = #tpu.dot_dimension_numbers<[1], [0], [0], [1], [0, 0, 1, 1], [], []>} : vector<32x32xf32>, vector<32x128xf32>, vector<32x128xf32> -> vector<32x128xf32>
    %c0_32 = arith.constant 0 : index
    %c0_33 = arith.constant 0 : index
    %c0_34 = arith.constant 0 : index
    %51 = vector.load %arg2[%c0_32, %c0_33, %c0_34] : memref<3x128x128xf32, #tpu.memory_space<vmem>>, vector<1x128x128xf32>
    %52 = vector.shape_cast %51 : vector<1x128x128xf32> to vector<128x128xf32>
    %cst_35 = arith.constant dense<0.000000e+00> : vector<32x128xf32>
    %53 = tpu.matmul %49, %52, %cst_35 {dimension_numbers = #tpu.dot_dimension_numbers<[1], [0], [0], [1], [0, 0, 1, 1], [], []>} : vector<32x128xf32>, vector<128x128xf32>, vector<32x128xf32> -> vector<32x128xf32>
    %c1_36 = arith.constant 1 : index
    %c0_37 = arith.constant 0 : index
    %c0_38 = arith.constant 0 : index
    %54 = vector.load %arg2[%c1_36, %c0_37, %c0_38] : memref<3x128x128xf32, #tpu.memory_space<vmem>>, vector<1x128x128xf32>
    %55 = vector.shape_cast %54 : vector<1x128x128xf32> to vector<128x128xf32>
    %cst_39 = arith.constant dense<0.000000e+00> : vector<32x128xf32>
    %56 = tpu.matmul %46, %55, %cst_39 {dimension_numbers = #tpu.dot_dimension_numbers<[1], [0], [0], [1], [0, 0, 1, 1], [], []>} : vector<32x128xf32>, vector<128x128xf32>, vector<32x128xf32> -> vector<32x128xf32>
    %57 = arith.addf %53, %56 : vector<32x128xf32>
    %c2_40 = arith.constant 2 : index
    %c0_41 = arith.constant 0 : index
    %c0_42 = arith.constant 0 : index
    %58 = vector.load %arg2[%c2_40, %c0_41, %c0_42] : memref<3x128x128xf32, #tpu.memory_space<vmem>>, vector<1x128x128xf32>
    %59 = vector.shape_cast %58 : vector<1x128x128xf32> to vector<128x128xf32>
    %cst_43 = arith.constant dense<0.000000e+00> : vector<32x128xf32>
    %60 = tpu.matmul %50, %59, %cst_43 {dimension_numbers = #tpu.dot_dimension_numbers<[1], [0], [0], [1], [0, 0, 1, 1], [], []>} : vector<32x128xf32>, vector<128x128xf32>, vector<32x128xf32> -> vector<32x128xf32>
    %61 = arith.addf %57, %60 : vector<32x128xf32>
    %cst_44 = arith.constant dense<0.000000e+00> : vector<128xf32>
    %62 = vector.multi_reduction <add>, %61, %cst_44 [0] : vector<32x128xf32> to vector<128xf32>
    %63 = vector.shape_cast %62 : vector<128xf32> to vector<1x128xf32>
    %64 = arith.mulf %61, %61 : vector<32x128xf32>
    %cst_45 = arith.constant dense<0.000000e+00> : vector<128xf32>
    %65 = vector.multi_reduction <add>, %64, %cst_45 [0] : vector<32x128xf32> to vector<128xf32>
    %66 = vector.shape_cast %65 : vector<128xf32> to vector<1x128xf32>
    %67 = tpu.concatenate %63, %66 in 0 : vector<1x128xf32>, vector<1x128xf32> -> vector<2x128xf32>
    %cst_46 = arith.constant dense<0.000000e+00> : vector<2x128xf32>
    %68 = tpu.matmul %67, %1, %cst_46 {dimension_numbers = #tpu.dot_dimension_numbers<[1], [0], [0], [1], [0, 0, 1, 1], [], []>} : vector<2x128xf32>, vector<128x128xf32>, vector<2x128xf32> -> vector<2x128xf32>
    %69 = vector.extract_strided_slice %68 {offsets = [0, 0], sizes = [1, 128], strides = [1, 1]} : vector<2x128xf32> to vector<1x128xf32>
    %70 = vector.extract_strided_slice %68 {offsets = [1, 0], sizes = [1, 128], strides = [1, 1]} : vector<2x128xf32> to vector<1x128xf32>
    %71 = arith.mulf %69, %69 : vector<1x128xf32>
    %72 = arith.subf %70, %71 : vector<1x128xf32>
    %cst_47 = arith.constant 9.99999974E-6 : f32
    %73 = vector.broadcast %cst_47 : f32 to vector<1x128xf32>
    %74 = arith.addf %72, %73 : vector<1x128xf32>
    %75 = math.rsqrt %74 : vector<1x128xf32>
    %76 = arith.mulf %75, %47 : vector<1x128xf32>
    %77 = vector.broadcast %69 : vector<1x128xf32> to vector<32x128xf32>
    %78 = arith.subf %61, %77 : vector<32x128xf32>
    %79 = vector.broadcast %76 : vector<1x128xf32> to vector<32x128xf32>
    %80 = arith.mulf %78, %79 : vector<32x128xf32>
    %81 = vector.broadcast %48 : vector<1x128xf32> to vector<32x128xf32>
    %82 = arith.addf %80, %81 : vector<32x128xf32>
    %cst_48 = arith.constant 0.000000e+00 : f32
    %83 = vector.broadcast %cst_48 : f32 to vector<32x128xf32>
    %84 = arith.maximumf %82, %83 : vector<32x128xf32>
    %c0_49 = arith.constant 0 : index
    %c0_50 = arith.constant 0 : index
    %85 = vector.load %arg9[%c0_49, %c0_50] : memref<32x128xf32, #tpu.memory_space<vmem>>, vector<32x128xf32>
    tpu.vector_store %arg9[%c0_49, %c0_50], %84 {strides = array<i32>} : memref<32x128xf32, #tpu.memory_space<vmem>>, vector<32x128xf32>,
    %c0_51 = arith.constant 0 : index
    %c0_52 = arith.constant 0 : index
    %c0_53 = arith.constant 0 : index
    %86 = vector.load %arg6[%c0_51, %c0_52, %c0_53] : memref<2x128x128xf32, #tpu.memory_space<vmem>>, vector<1x128x128xf32>
    %87 = vector.shape_cast %86 : vector<1x128x128xf32> to vector<128x128xf32>
    %cst_54 = arith.constant dense<0.000000e+00> : vector<32x128xf32>
    %88 = tpu.matmul %84, %87, %cst_54 {dimension_numbers = #tpu.dot_dimension_numbers<[1], [0], [0], [1], [0, 0, 1, 1], [], []>} : vector<32x128xf32>, vector<128x128xf32>, vector<32x128xf32> -> vector<32x128xf32>
    %c1_55 = arith.constant 1 : index
    %c0_56 = arith.constant 0 : index
    %c0_57 = arith.constant 0 : index
    %89 = vector.load %arg6[%c1_55, %c0_56, %c0_57] : memref<2x128x128xf32, #tpu.memory_space<vmem>>, vector<1x128x128xf32>
    %90 = vector.shape_cast %89 : vector<1x128x128xf32> to vector<128x128xf32>
    %cst_58 = arith.constant dense<0.000000e+00> : vector<32x128xf32>
    %91 = tpu.matmul %84, %90, %cst_58 {dimension_numbers = #tpu.dot_dimension_numbers<[1], [0], [0], [1], [0, 0, 1, 1], [], []>} : vector<32x128xf32>, vector<128x128xf32>, vector<32x128xf32> -> vector<32x128xf32>
    %92 = arith.maximumf %88, %91 : vector<32x128xf32>
    %cst_59 = arith.constant dense<0.000000e+00> : vector<32x128xf32>
    %93 = tpu.matmul %7, %92, %cst_59 {dimension_numbers = #tpu.dot_dimension_numbers<[1], [0], [0], [1], [0, 0, 1, 1], [], []>} : vector<32x32xf32>, vector<32x128xf32>, vector<32x128xf32> -> vector<32x128xf32>
    %94 = arith.maximumf %92, %93 : vector<32x128xf32>
    %c0_60 = arith.constant 0 : index
    %c0_61 = arith.constant 0 : index
    %c0_62 = arith.constant 0 : index
    %95 = vector.load %arg7[%c0_60, %c0_61, %c0_62] : memref<2x8x32xf32, #tpu.memory_space<vmem>>, vector<1x8x32xf32>
    %96 = vector.shape_cast %95 : vector<1x8x32xf32> to vector<8x32xf32>
    %cst_63 = arith.constant dense<0.000000e+00> : vector<8x128xf32>
    %97 = tpu.matmul %96, %94, %cst_63 {dimension_numbers = #tpu.dot_dimension_numbers<[1], [0], [0], [1], [0, 0, 1, 1], [], []>} : vector<8x32xf32>, vector<32x128xf32>, vector<8x128xf32> -> vector<8x128xf32>
    %c1_64 = arith.constant 1 : index
    %c0_65 = arith.constant 0 : index
    %c0_66 = arith.constant 0 : index
    %98 = vector.load %arg7[%c1_64, %c0_65, %c0_66] : memref<2x8x32xf32, #tpu.memory_space<vmem>>, vector<1x8x32xf32>
    %99 = vector.shape_cast %98 : vector<1x8x32xf32> to vector<8x32xf32>
    %cst_67 = arith.constant dense<0.000000e+00> : vector<8x128xf32>
    %100 = tpu.matmul %99, %94, %cst_67 {dimension_numbers = #tpu.dot_dimension_numbers<[1], [0], [0], [1], [0, 0, 1, 1], [], []>} : vector<8x32xf32>, vector<32x128xf32>, vector<8x128xf32> -> vector<8x128xf32>
    %101 = tpu.iota {dimensions = array<i32: 1>} : vector<8x128xi32>
    %c64_i32 = arith.constant 64 : i32
    %102 = vector.broadcast %c64_i32 : i32 to vector<8x128xi32>
    %103 = arith.cmpi slt, %101, %102 : vector<8x128xi32>
    %104 = arith.select %103, %97, %100 : vector<8x128xi1>, vector<8x128xf32>
    %c0_68 = arith.constant 0 : index
    %c0_69 = arith.constant 0 : index
    %105 = vector.load %arg8[%c0_68, %c0_69] : memref<8x128xf32, #tpu.memory_space<vmem>>, vector<8x128xf32>
    tpu.vector_store %arg8[%c0_68, %c0_69], %104 {strides = array<i32>} : memref<8x128xf32, #tpu.memory_space<vmem>>, vector<8x128xf32>,
    return
  }
}

</mosaic_0001>

<llo_original>
// kernel: tpu_custom_call.1
$region0: #{tpu_custom_call.1}
  #allocation0 [shape = 'u32[]', space=smem, size = 0x4, offset = 0x4, fixed_abs, tag = 'smem constant byte address 0x4 - core index']
  #allocation1 [shape = 'u32[144,128]{1,0:T(1,128)}', space=vmem, size = 0x12000, scoped, tag = 'internal scratch']
  %s0 = inlined_call_operand.hbm [shape: f32[32,64], index: 0, kind: input, shape index: {}]
  %s1 = inlined_call_operand.hbm [shape: f32[3,64,128], index: 1, kind: input, shape index: {}]
  %s2 = inlined_call_operand.hbm [shape: f32[3,128,128], index: 2, kind: input, shape index: {}]
  %s3 = inlined_call_operand.vmem [shape: f32[4,128], index: 3, kind: input, shape index: {}]
  %s4 = inlined_call_operand.hbm [shape: f32[128,128], index: 4, kind: input, shape index: {}]
  %s5 = inlined_call_operand.hbm [shape: f32[3,32,32], index: 5, kind: input, shape index: {}]
  %s6 = inlined_call_operand.hbm [shape: f32[2,128,128], index: 6, kind: input, shape index: {}]
  %s7 = inlined_call_operand.vmem [shape: f32[2,8,32], index: 7, kind: input, shape index: {}]
  %s8 = inlined_call_operand.hbm [shape: f32[8,128], index: 8, kind: output, shape index: {0}]
  %s9 = inlined_call_operand.hbm [shape: f32[32,128], index: 9, kind: output, shape index: {1}]
  %10 = xla_tuple %s8, %s9
  %s11 = sld [smem:[#allocation0]]
  $region74: #{tpu_custom_call.1} parent=0
    _
  %s13 = ssub.s32 1, %s11
  %s14 = scalar_select 0, %s13, %s11
  $region1: #{tpu_custom_call.1} parent=0
    #allocation2 [shape = 'u8[16384]{0}', space=vmem, size = 0x4000, scoped, tag = 'input window, operand 0, single buffered']
    #allocation3 [shape = 's32[1]{0}', space=sflag, size = 0x4, scoped, tag = 'scoped memory for tpu_custom_call.1']
    #allocation4 [shape = 's32[1]{0}', space=sflag, size = 0x4, scoped, tag = 'scoped memory for tpu_custom_call.1']
    #allocation5 [shape = 'u8[98304]{0}', space=vmem, size = 0x18000, scoped, tag = 'input window, operand 1, single buffered']
    #allocation6 [shape = 's32[1]{0}', space=sflag, size = 0x4, scoped, tag = 'scoped memory for tpu_custom_call.1']
    #allocation7 [shape = 'u8[196608]{0}', space=vmem, size = 0x30000, scoped, tag = 'input window, operand 2, single buffered']
    #allocation8 [shape = 'u8[65536]{0}', space=vmem, size = 0x10000, scoped, tag = 'input window, operand 4, single buffered']
    #allocation9 [shape = 's32[1]{0}', space=sflag, size = 0x4, scoped, tag = 'scoped memory for tpu_custom_call.1']
    #allocation10 [shape = 'u8[49152]{0}', space=vmem, size = 0xc000, scoped, tag = 'input window, operand 5, single buffered']
    #allocation11 [shape = 'u8[131072]{0}', space=vmem, size = 0x20000, scoped, tag = 'input window, operand 6, single buffered']
    #allocation12 [shape = 's32[1]{0}', space=sflag, size = 0x4, scoped, tag = 'scoped memory for tpu_custom_call.1']
    #allocation13 [shape = 'u8[4096]{0}', space=vmem, size = 0x1000, scoped, tag = 'output window, operand 0, single buffered']
    #allocation14 [shape = 'u8[16384]{0}', space=vmem, size = 0x4000, scoped, tag = 'output window, operand 1, single buffered']
    #allocation15 [shape = 's32[1]{0}', space=sflag, size = 0x4, scoped, tag = 'scoped memory for tpu_custom_call.1']
    %15 = vsyncpa [#allocation3], 0
    %16 = vsyncpa [#allocation6], 0
    %17 = vsyncpa [#allocation9], 0
    %18 = vsyncpa [#allocation12], 0
    %19 = vsyncpa [#allocation4], 0
    %20 = vsyncpa [#allocation15], 0
    // Predicated region
    $region2: #{tpu_custom_call.1} parent=1 // pred_check
      _
    $region3: #{tpu_custom_call.1} parent=1 // pred_check_branch
      %22 = sbr.rel (0) target = $region5
    $region4: #{tpu_custom_call.1} parent=1 // pred_region
      %s24 = ssub.s32 512, 512
      %25 = vsyncadd [#allocation3], %s24
      %s26 = sshll.u32 [#allocation2], 4
      %s27 = int_to_ptr.vmem [resolvable:$true] %s26
      %32 = dma.hbm_to_vmem [thread:$0]  %s0, 512, %s27, [#allocation3], 128, 128, 8
    $region5: #{tpu_custom_call.1} parent=1 // pred_fallthru
      _
    // Predicated region
    $region6: #{tpu_custom_call.1} parent=1 // pred_check
      _
    $region7: #{tpu_custom_call.1} parent=1 // pred_check_branch
      %34 = sbr.rel (0) target = $region9
    $region8: #{tpu_custom_call.1} parent=1 // pred_region
      %s36 = ssub.s32 3072, 3072
      %37 = vsyncadd [#allocation6], %s36
      %s38 = sshll.u32 [#allocation5], 4
      %s39 = int_to_ptr.vmem [resolvable:$true] %s38
      %44 = dma.hbm_to_vmem [thread:$0]  %s1, 3072, %s39, [#allocation6], 128, 128, 8
    $region9: #{tpu_custom_call.1} parent=1 // pred_fallthru
      _
    // Predicated region
    $region10: #{tpu_custom_call.1} parent=1 // pred_check
      _
    $region11: #{tpu_custom_call.1} parent=1 // pred_check_branch
      %46 = sbr.rel (0) target = $region13
    $region12: #{tpu_custom_call.1} parent=1 // pred_region
      %s48 = ssub.s32 6144, 6144
      %49 = vsyncadd [#allocation6], %s48
      %s50 = sshll.u32 [#allocation7], 4
      %s51 = int_to_ptr.vmem [resolvable:$true] %s50
      %56 = dma.hbm_to_vmem [thread:$0]  %s2, 6144, %s51, [#allocation6], 128, 128, 8
    $region13: #{tpu_custom_call.1} parent=1 // pred_fallthru
      _
    // Predicated region
    $region14: #{tpu_custom_call.1} parent=1 // pred_check
      _
    $region15: #{tpu_custom_call.1} parent=1 // pred_check_branch
      %58 = sbr.rel (0) target = $region17
    $region16: #{tpu_custom_call.1} parent=1 // pred_region
      _
    $region17: #{tpu_custom_call.1} parent=1 // pred_fallthru
      _
    // Predicated region
    $region18: #{tpu_custom_call.1} parent=1 // pred_check
      _
    $region19: #{tpu_custom_call.1} parent=1 // pred_check_branch
      %60 = sbr.rel (0) target = $region21
    $region20: #{tpu_custom_call.1} parent=1 // pred_region
      %s62 = ssub.s32 2048, 2048
      %63 = vsyncadd [#allocation9], %s62
      %s64 = sshll.u32 [#allocation8], 4
      %s65 = int_to_ptr.vmem [resolvable:$true] %s64
      %70 = dma.hbm_to_vmem [thread:$0]  %s4, 2048, %s65, [#allocation9], 128, 128, 8
    $region21: #{tpu_custom_call.1} parent=1 // pred_fallthru
      _
    // Predicated region
    $region22: #{tpu_custom_call.1} parent=1 // pred_check
      _
    $region23: #{tpu_custom_call.1} parent=1 // pred_check_branch
      %72 = sbr.rel (0) target = $region25
    $region24: #{tpu_custom_call.1} parent=1 // pred_region
      %s74 = ssub.s32 1536, 1536
      %75 = vsyncadd [#allocation9], %s74
      %s76 = sshll.u32 [#allocation10], 4
      %s77 = int_to_ptr.vmem [resolvable:$true] %s76
      %82 = dma.hbm_to_vmem [thread:$0]  %s5, 1536, %s77, [#allocation9], 128, 128, 8
    $region25: #{tpu_custom_call.1} parent=1 // pred_fallthru
      _
    // Predicated region
    $region26: #{tpu_custom_call.1} parent=1 // pred_check
      _
    $region27: #{tpu_custom_call.1} parent=1 // pred_check_branch
      %84 = sbr.rel (0) target = $region29
    $region28: #{tpu_custom_call.1} parent=1 // pred_region
      %s86 = ssub.s32 4096, 4096
      %87 = vsyncadd [#allocation12], %s86
      %s88 = sshll.u32 [#allocation11], 4
      %s89 = int_to_ptr.vmem [resolvable:$true] %s88
      %94 = dma.hbm_to_vmem [thread:$0]  %s6, 4096, %s89, [#allocation12], 128, 128, 8
    $region29: #{tpu_custom_call.1} parent=1 // pred_fallthru
      _
    // Predicated region
    $region30: #{tpu_custom_call.1} parent=1 // pred_check
      _
    $region31: #{tpu_custom_call.1} parent=1 // pred_check_branch
      %96 = sbr.rel (0) target = $region33
    $region32: #{tpu_custom_call.1} parent=1 // pred_region
      _
    $region33: #{tpu_custom_call.1} parent=1 // pred_fallthru
      _
    // Predicated region
    $region34: #{tpu_custom_call.1} parent=1 // pred_check
      _
    $region35: #{tpu_custom_call.1} parent=1 // pred_check_branch
      %98 = sbr.rel (0) target = $region37
    $region36: #{tpu_custom_call.1} parent=1 // pred_region
      %99 = dma.done [#allocation3], 512
    $region37: #{tpu_custom_call.1} parent=1 // pred_fallthru
      _
    // Predicated region
    $region38: #{tpu_custom_call.1} parent=1 // pred_check
      _
    $region39: #{tpu_custom_call.1} parent=1 // pred_check_branch
      %101 = sbr.rel (0) target = $region41
    $region40: #{tpu_custom_call.1} parent=1 // pred_region
      %102 = dma.done [#allocation6], 3072
    $region41: #{tpu_custom_call.1} parent=1 // pred_fallthru
      _
    // Predicated region
    $region42: #{tpu_custom_call.1} parent=1 // pred_check
      _
    $region43: #{tpu_custom_call.1} parent=1 // pred_check_branch
      %104 = sbr.rel (0) target = $region45
    $region44: #{tpu_custom_call.1} parent=1 // pred_region
      %105 = dma.done [#allocation6], 6144
    $region45: #{tpu_custom_call.1} parent=1 // pred_fallthru
      _
    // Predicated region
    $region46: #{tpu_custom_call.1} parent=1 // pred_check
      _
    $region47: #{tpu_custom_call.1} parent=1 // pred_check_branch
      %107 = sbr.rel (0) target = $region49
    $region48: #{tpu_custom_call.1} parent=1 // pred_region
      %108 = dma.done [#allocation9], 2048
    $region49: #{tpu_custom_call.1} parent=1 // pred_fallthru
      _
    // Predicated region
    $region50: #{tpu_custom_call.1} parent=1 // pred_check
      _
    $region51: #{tpu_custom_call.1} parent=1 // pred_check_branch
      %110 = sbr.rel (0) target = $region53
    $region52: #{tpu_custom_call.1} parent=1 // pred_region
      %111 = dma.done [#allocation9], 1536
    $region53: #{tpu_custom_call.1} parent=1 // pred_fallthru
      _
    // Predicated region
    $region54: #{tpu_custom_call.1} parent=1 // pred_check
      _
    $region55: #{tpu_custom_call.1} parent=1 // pred_check_branch
      %113 = sbr.rel (0) target = $region57
    $region56: #{tpu_custom_call.1} parent=1 // pred_region
      %114 = dma.done [#allocation12], 4096
    $region57: #{tpu_custom_call.1} parent=1 // pred_fallthru
      _
    %v115 = vld [vmem:[%s3] sm:$0xf]
    %v116 = vld [vmem:[#allocation8] sm:$0xff]
    %v117 = vld [vmem:[#allocation8 + $0x8] sm:$0xff]
    %v118 = vld [vmem:[#allocation8 + $0x10] sm:$0xff]
    %v119 = vld [vmem:[#allocation8 + $0x18] sm:$0xff]
    %v120 = vld [vmem:[#allocation8 + $0x20] sm:$0xff]
    %v121 = vld [vmem:[#allocation8 + $0x28] sm:$0xff]
    %v122 = vld [vmem:[#allocation8 + $0x30] sm:$0xff]
    %v123 = vld [vmem:[#allocation8 + $0x38] sm:$0xff]
    %v124 = vld [vmem:[#allocation8 + $0x40] sm:$0xff]
    %v125 = vld [vmem:[#allocation8 + $0x48] sm:$0xff]
    %v126 = vld [vmem:[#allocation8 + $0x50] sm:$0xff]
    %v127 = vld [vmem:[#allocation8 + $0x58] sm:$0xff]
    %v128 = vld [vmem:[#allocation8 + $0x60] sm:$0xff]
    %v129 = vld [vmem:[#allocation8 + $0x68] sm:$0xff]
    %v130 = vld [vmem:[#allocation8 + $0x70] sm:$0xff]
    %v131 = vld [vmem:[#allocation8 + $0x78] sm:$0xff]
    %v132 = vld [vmem:[#allocation10] sm:$0xff]
    %v133 = vld [vmem:[#allocation10 + $0x8] sm:$0xff]
    %v134 = vld [vmem:[#allocation10 + $0x10] sm:$0xff]
    %v135 = vld [vmem:[#allocation10 + $0x18] sm:$0xff]
    %s136 = scalar_lea.vmem [#allocation10], 32
    %v137 = vld [vmem:[%s136] sm:$0xff]
    %v138 = vld [vmem:[%s136 + $0x8] sm:$0xff]
    %v139 = vld [vmem:[%s136 + $0x10] sm:$0xff]
    %v140 = vld [vmem:[%s136 + $0x18] sm:$0xff]
    %s141 = scalar_lea.vmem [#allocation10], 64
    %v142 = vld [vmem:[%s141] sm:$0xff]
    %v143 = vld [vmem:[%s141 + $0x8] sm:$0xff]
    %v144 = vld [vmem:[%s141 + $0x10] sm:$0xff]
    %v145 = vld [vmem:[%s141 + $0x18] sm:$0xff]
    %v146 = vld [vmem:[#allocation2] sm:$0xff]
    %v147 = vld [vmem:[#allocation2 + $0x8] sm:$0xff]
    %v148 = vld [vmem:[#allocation2 + $0x10] sm:$0xff]
    %v149 = vld [vmem:[#allocation2 + $0x18] sm:$0xff]
    %vm150 = vcmask 261120
    %v152 = vsel %vm150, %v132, 0
    %v155 = vsel %vm150, %v133, 0
    %v158 = vsel %vm150, %v134, 0
    %v161 = vsel %vm150, %v135, 0
    %163 = vmatprep.subr.mxu0 0.0
    %164 = vmatpush1.msra.mxu0 %v146
    %165 = vmatprep.subr.mxu0 0.0
    %166 = vmatpush1.msra.mxu0 %v147
    %167 = vmatprep.subr.mxu0 0.0
    %168 = vmatpush1.msra.mxu0 %v148
    %169 = vmatprep.subr.mxu0 0.0
    %170 = vmatpush1.msra.mxu0 %v149
    %171 = vmatprep.subr.mxu0 0.0
    %172 = vmatpush1.msra.mxu0 0.0
    %173 = vmatprep.subr.mxu0 0.0
    %174 = vmatpush1.msra.mxu0 0.0
    %175 = vmatprep.subr.mxu0 0.0
    %176 = vmatpush1.msra.mxu0 0.0
    %177 = vmatprep.subr.mxu0 0.0
    %178 = vmatpush1.msra.mxu0 0.0
    %179 = vmatprep.subr.mxu0 0.0
    %180 = vmatpush1.msra.mxu0 0.0
    %181 = vmatprep.subr.mxu0 0.0
    %182 = vmatpush1.msra.mxu0 0.0
    %183 = vmatprep.subr.mxu0 0.0
    %184 = vmatpush1.msra.mxu0 0.0
    %185 = vmatprep.subr.mxu0 0.0
    %186 = vmatpush1.msra.mxu0 0.0
    %187 = vmatprep.subr.mxu0 0.0
    %188 = vmatpush1.msra.mxu0 0.0
    %189 = vmatprep.subr.mxu0 0.0
    %190 = vmatpush1.msra.mxu0 0.0
    %191 = vmatprep.subr.mxu0 0.0
    %192 = vmatpush1.msra.mxu0 0.0
    %193 = vmatprep.subr.mxu0 0.0
    %194 = vmatpush1.msra.mxu0 0.0
    %195 = vmatprep.subr.mxu0 0.0
    %196 = vmatpush1.msra.mxu0 0.0
    %197 = vmatprep.subr.mxu0 0.0
    %198 = vmatpush1.msra.mxu0 0.0
    %199 = vmatprep.subr.mxu0 0.0
    %200 = vmatpush1.msra.mxu0 0.0
    %201 = vmatprep.subr.mxu0 0.0
    %202 = vmatpush1.msra.mxu0 0.0
    %203 = vmatprep.subr.mxu0 0.0
    %204 = vmatpush1.msra.mxu0 0.0
    %205 = vmatprep.subr.mxu0 0.0
    %206 = vmatpush1.msra.mxu0 0.0
    %207 = vmatprep.subr.mxu0 0.0
    %208 = vmatpush1.msra.mxu0 0.0
    %209 = vmatprep.subr.mxu0 0.0
    %210 = vmatpush1.msra.mxu0 0.0
    %211 = vmatprep.subr.mxu0 0.0
    %212 = vmatpush1.msra.mxu0 0.0
    %213 = vmatprep.subr.mxu0 0.0
    %214 = vmatpush1.msra.mxu0 0.0
    %215 = vmatprep.subr.mxu0 0.0
    %216 = vmatpush1.msra.mxu0 0.0
    %217 = vmatprep.subr.mxu0 0.0
    %218 = vmatpush1.msra.mxu0 0.0
    %219 = vmatprep.subr.mxu0 0.0
    %220 = vmatpush1.msra.mxu0 0.0
    %221 = vmatprep.subr.mxu0 0.0
    %222 = vmatpush1.msra.mxu0 0.0
    %223 = vmatprep.subr.mxu0 0.0
    %224 = vmatpush1.msra.mxu0 0.0
    %225 = vmatprep.subr.mxu0 0.0
    %226 = vmatpush1.msra.mxu0 0.0
    %227 = vmatprep.mubr.f32.mxu0 0.0
    %228 = vmatmul.mubr.f32.gmra.mrb[0].mxu0 %v152
    %v229 = vpop.f32.mrb[0].mxu0
    %v230 = vadd.f32 0.0, %v229
    %v231 = vpop.f32.mrb[0].mxu0
    %232 = vmatprep.mubr.f32.mxu0 0.0
    %233 = vmatmul.mubr.f32.gmra.mrb[0].mxu0 %v155
    %v234 = vpop.f32.mrb[0].mxu0
    %v235 = vadd.f32 0.0, %v234
    %v236 = vpop.f32.mrb[0].mxu0
    %237 = vmatprep.mubr.f32.mxu0 0.0
    %238 = vmatmul.mubr.f32.gmra.mrb[0].mxu0 %v158
    %v239 = vpop.f32.mrb[0].mxu0
    %v240 = vadd.f32 0.0, %v239
    %v241 = vpop.f32.mrb[0].mxu0
    %242 = vmatprep.mubr.f32.mxu0 0.0
    %243 = vmatmul.mubr.f32.gmra.mrb[0].mxu0 %v161
    %v244 = vpop.f32.mrb[0].mxu0
    %v245 = vadd.f32 0.0, %v244
    %v246 = vpop.f32.mrb[0].mxu0
    %247 = vdwg.mxu0
    %v249 = vsel %vm150, %v137, 0
    %v252 = vsel %vm150, %v138, 0
    %v255 = vsel %vm150, %v139, 0
    %v258 = vsel %vm150, %v140, 0
    %260 = vmatprep.subr.mxu0 0.0
    %261 = vmatpush1.msra.mxu0 %v146
    %262 = vmatprep.subr.mxu0 0.0
    %263 = vmatpush1.msra.mxu0 %v147
    %264 = vmatprep.subr.mxu0 0.0
    %265 = vmatpush1.msra.mxu0 %v148
    %266 = vmatprep.subr.mxu0 0.0
    %267 = vmatpush1.msra.mxu0 %v149
    %268 = vmatprep.subr.mxu0 0.0
    %269 = vmatpush1.msra.mxu0 0.0
    %270 = vmatprep.subr.mxu0 0.0
    %271 = vmatpush1.msra.mxu0 0.0
    %272 = vmatprep.subr.mxu0 0.0
    %273 = vmatpush1.msra.mxu0 0.0
    %274 = vmatprep.subr.mxu0 0.0
    %275 = vmatpush1.msra.mxu0 0.0
    %276 = vmatprep.subr.mxu0 0.0
    %277 = vmatpush1.msra.mxu0 0.0
    %278 = vmatprep.subr.mxu0 0.0
    %279 = vmatpush1.msra.mxu0 0.0
    %280 = vmatprep.subr.mxu0 0.0
    %281 = vmatpush1.msra.mxu0 0.0
    %282 = vmatprep.subr.mxu0 0.0
    %283 = vmatpush1.msra.mxu0 0.0
    %284 = vmatprep.subr.mxu0 0.0
    %285 = vmatpush1.msra.mxu0 0.0
    %286 = vmatprep.subr.mxu0 0.0
    %287 = vmatpush1.msra.mxu0 0.0
    %288 = vmatprep.subr.mxu0 0.0
    %289 = vmatpush1.msra.mxu0 0.0
    %290 = vmatprep.subr.mxu0 0.0
    %291 = vmatpush1.msra.mxu0 0.0
    %292 = vmatprep.subr.mxu0 0.0
    %293 = vmatpush1.msra.mxu0 0.0
    %294 = vmatprep.subr.mxu0 0.0
    %295 = vmatpush1.msra.mxu0 0.0
    %296 = vmatprep.subr.mxu0 0.0
    %297 = vmatpush1.msra.mxu0 0.0
    %298 = vmatprep.subr.mxu0 0.0
    %299 = vmatpush1.msra.mxu0 0.0
    %300 = vmatprep.subr.mxu0 0.0
    %301 = vmatpush1.msra.mxu0 0.0
    %302 = vmatprep.subr.mxu0 0.0
    %303 = vmatpush1.msra.mxu0 0.0
    %304 = vmatprep.subr.mxu0 0.0
    %305 = vmatpush1.msra.mxu0 0.0
    %306 = vmatprep.subr.mxu0 0.0
    %307 = vmatpush1.msra.mxu0 0.0
    %308 = vmatprep.subr.mxu0 0.0
    %309 = vmatpush1.msra.mxu0 0.0
    %310 = vmatprep.subr.mxu0 0.0
    %311 = vmatpush1.msra.mxu0 0.0
    %312 = vmatprep.subr.mxu0 0.0
    %313 = vmatpush1.msra.mxu0 0.0
    %314 = vmatprep.subr.mxu0 0.0
    %315 = vmatpush1.msra.mxu0 0.0
    %316 = vmatprep.subr.mxu0 0.0
    %317 = vmatpush1.msra.mxu0 0.0
    %318 = vmatprep.subr.mxu0 0.0
    %319 = vmatpush1.msra.mxu0 0.0
    %320 = vmatprep.subr.mxu0 0.0
    %321 = vmatpush1.msra.mxu0 0.0
    %322 = vmatprep.subr.mxu0 0.0
    %323 = vmatpush1.msra.mxu0 0.0
    %324 = vmatprep.mubr.f32.mxu0 0.0
    %325 = vmatmul.mubr.f32.gmra.mrb[0].mxu0 %v249
    %v326 = vpop.f32.mrb[0].mxu0
    %v327 = vadd.f32 0.0, %v326
    %v328 = vpop.f32.mrb[0].mxu0
    %329 = vmatprep.mubr.f32.mxu0 0.0
    %330 = vmatmul.mubr.f32.gmra.mrb[0].mxu0 %v252
    %v331 = vpop.f32.mrb[0].mxu0
    %v332 = vadd.f32 0.0, %v331
    %v333 = vpop.f32.mrb[0].mxu0
    %334 = vmatprep.mubr.f32.mxu0 0.0
    %335 = vmatmul.mubr.f32.gmra.mrb[0].mxu0 %v255
    %v336 = vpop.f32.mrb[0].mxu0
    %v337 = vadd.f32 0.0, %v336
    %v338 = vpop.f32.mrb[0].mxu0
    %339 = vmatprep.mubr.f32.mxu0 0.0
    %340 = vmatmul.mubr.f32.gmra.mrb[0].mxu0 %v258
    %v341 = vpop.f32.mrb[0].mxu0
    %v342 = vadd.f32 0.0, %v341
    %v343 = vpop.f32.mrb[0].mxu0
    %344 = vdwg.mxu0
    %v345 = vld [vmem:[#allocation5] sm:$0xff]
    %v346 = vld [vmem:[#allocation5 + $0x8] sm:$0xff]
    %v347 = vld [vmem:[#allocation5 + $0x10] sm:$0xff]
    %v348 = vld [vmem:[#allocation5 + $0x18] sm:$0xff]
    %v349 = vld [vmem:[#allocation5 + $0x20] sm:$0xff]
    %v350 = vld [vmem:[#allocation5 + $0x28] sm:$0xff]
    %v351 = vld [vmem:[#allocation5 + $0x30] sm:$0xff]
    %v352 = vld [vmem:[#allocation5 + $0x38] sm:$0xff]
    %s353 = scalar_lea.vmem [#allocation5], 64
    %v354 = vld [vmem:[%s353] sm:$0xff]
    %v355 = vld [vmem:[%s353 + $0x8] sm:$0xff]
    %v356 = vld [vmem:[%s353 + $0x10] sm:$0xff]
    %v357 = vld [vmem:[%s353 + $0x18] sm:$0xff]
    %v358 = vld [vmem:[%s353 + $0x20] sm:$0xff]
    %v359 = vld [vmem:[%s353 + $0x28] sm:$0xff]
    %v360 = vld [vmem:[%s353 + $0x30] sm:$0xff]
    %v361 = vld [vmem:[%s353 + $0x38] sm:$0xff]
    %vm362 = vcmask 523264
    %v364 = vsel %vm362, %v146, 0
    %v367 = vsel %vm362, %v147, 0
    %v370 = vsel %vm362, %v148, 0
    %v373 = vsel %vm362, %v149, 0
    %375 = vmatprep.subr.mxu0 0.0
    %376 = vmatpush1.msra.mxu0 %v354
    %377 = vmatprep.subr.mxu0 0.0
    %378 = vmatpush1.msra.mxu0 %v355
    %379 = vmatprep.subr.mxu0 0.0
    %380 = vmatpush1.msra.mxu0 %v356
    %381 = vmatprep.subr.mxu0 0.0
    %382 = vmatpush1.msra.mxu0 %v357
    %383 = vmatprep.subr.mxu0 0.0
    %384 = vmatpush1.msra.mxu0 %v358
    %385 = vmatprep.subr.mxu0 0.0
    %386 = vmatpush1.msra.mxu0 %v359
    %387 = vmatprep.subr.mxu0 0.0
    %388 = vmatpush1.msra.mxu0 %v360
    %389 = vmatprep.subr.mxu0 0.0
    %390 = vmatpush1.msra.mxu0 %v361
    %391 = vmatprep.subr.mxu0 0.0
    %392 = vmatpush1.msra.mxu0 0.0
    %393 = vmatprep.subr.mxu0 0.0
    %394 = vmatpush1.msra.mxu0 0.0
    %395 = vmatprep.subr.mxu0 0.0
    %396 = vmatpush1.msra.mxu0 0.0
    %397 = vmatprep.subr.mxu0 0.0
    %398 = vmatpush1.msra.mxu0 0.0
    %399 = vmatprep.subr.mxu0 0.0
    %400 = vmatpush1.msra.mxu0 0.0
    %401 = vmatprep.subr.mxu0 0.0
    %402 = vmatpush1.msra.mxu0 0.0
    %403 = vmatprep.subr.mxu0 0.0
    %404 = vmatpush1.msra.mxu0 0.0
    %405 = vmatprep.subr.mxu0 0.0
    %406 = vmatpush1.msra.mxu0 0.0
    %407 = vmatprep.subr.mxu0 0.0
    %408 = vmatpush1.msra.mxu0 0.0
    %409 = vmatprep.subr.mxu0 0.0
    %410 = vmatpush1.msra.mxu0 0.0
    %411 = vmatprep.subr.mxu0 0.0
    %412 = vmatpush1.msra.mxu0 0.0
    %413 = vmatprep.subr.mxu0 0.0
    %414 = vmatpush1.msra.mxu0 0.0
    %415 = vmatprep.subr.mxu0 0.0
    %416 = vmatpush1.msra.mxu0 0.0
    %417 = vmatprep.subr.mxu0 0.0
    %418 = vmatpush1.msra.mxu0 0.0
    %419 = vmatprep.subr.mxu0 0.0
    %420 = vmatpush1.msra.mxu0 0.0
    %421 = vmatprep.subr.mxu0 0.0
    %422 = vmatpush1.msra.mxu0 0.0
    %423 = vmatprep.subr.mxu0 0.0
    %424 = vmatpush1.msra.mxu0 0.0
    %425 = vmatprep.subr.mxu0 0.0
    %426 = vmatpush1.msra.mxu0 0.0
    %427 = vmatprep.subr.mxu0 0.0
    %428 = vmatpush1.msra.mxu0 0.0
    %429 = vmatprep.subr.mxu0 0.0
    %430 = vmatpush1.msra.mxu0 0.0
    %431 = vmatprep.subr.mxu0 0.0
    %432 = vmatpush1.msra.mxu0 0.0
    %433 = vmatprep.subr.mxu0 0.0
    %434 = vmatpush1.msra.mxu0 0.0
    %435 = vmatprep.subr.mxu0 0.0
    %436 = vmatpush1.msra.mxu0 0.0
    %437 = vmatprep.subr.mxu0 0.0
    %438 = vmatpush1.msra.mxu0 0.0
    %439 = vmatprep.mubr.f32.mxu0 0.0
    %440 = vmatmul.mubr.f32.gmra.mrb[0].mxu0 %v364
    %v441 = vpop.f32.mrb[0].mxu0
    %v442 = vadd.f32 0.0, %v441
    %v443 = vpop.f32.mrb[0].mxu0
    %444 = vmatprep.mubr.f32.mxu0 0.0
    %445 = vmatmul.mubr.f32.gmra.mrb[0].mxu0 %v367
    %v446 = vpop.f32.mrb[0].mxu0
    %v447 = vadd.f32 0.0, %v446
    %v448 = vpop.f32.mrb[0].mxu0
    %449 = vmatprep.mubr.f32.mxu0 0.0
    %450 = vmatmul.mubr.f32.gmra.mrb[0].mxu0 %v370
    %v451 = vpop.f32.mrb[0].mxu0
    %v452 = vadd.f32 0.0, %v451
    %v453 = vpop.f32.mrb[0].mxu0
    %454 = vmatprep.mubr.f32.mxu0 0.0
    %455 = vmatmul.mubr.f32.gmra.mrb[0].mxu0 %v373
    %v456 = vpop.f32.mrb[0].mxu0
    %v457 = vadd.f32 0.0, %v456
    %v458 = vpop.f32.mrb[0].mxu0
    %459 = vdwg.mxu0
    %v461 = vsel %vm362, %v230, 0
    %v464 = vsel %vm362, %v235, 0
    %v467 = vsel %vm362, %v240, 0
    %v470 = vsel %vm362, %v245, 0
    %472 = vmatprep.subr.mxu0 0.0
    %473 = vmatpush1.msra.mxu0 %v345
    %474 = vmatprep.subr.mxu0 0.0
    %475 = vmatpush1.msra.mxu0 %v346
    %476 = vmatprep.subr.mxu0 0.0
    %477 = vmatpush1.msra.mxu0 %v347
    %478 = vmatprep.subr.mxu0 0.0
    %479 = vmatpush1.msra.mxu0 %v348
    %480 = vmatprep.subr.mxu0 0.0
    %481 = vmatpush1.msra.mxu0 %v349
    %482 = vmatprep.subr.mxu0 0.0
    %483 = vmatpush1.msra.mxu0 %v350
    %484 = vmatprep.subr.mxu0 0.0
    %485 = vmatpush1.msra.mxu0 %v351
    %486 = vmatprep.subr.mxu0 0.0
    %487 = vmatpush1.msra.mxu0 %v352
    %488 = vmatprep.subr.mxu0 0.0
    %489 = vmatpush1.msra.mxu0 0.0
    %490 = vmatprep.subr.mxu0 0.0
    %491 = vmatpush1.msra.mxu0 0.0
    %492 = vmatprep.subr.mxu0 0.0
    %493 = vmatpush1.msra.mxu0 0.0
    %494 = vmatprep.subr.mxu0 0.0
    %495 = vmatpush1.msra.mxu0 0.0
    %496 = vmatprep.subr.mxu0 0.0
    %497 = vmatpush1.msra.mxu0 0.0
    %498 = vmatprep.subr.mxu0 0.0
    %499 = vmatpush1.msra.mxu0 0.0
    %500 = vmatprep.subr.mxu0 0.0
    %501 = vmatpush1.msra.mxu0 0.0
    %502 = vmatprep.subr.mxu0 0.0
    %503 = vmatpush1.msra.mxu0 0.0
    %504 = vmatprep.subr.mxu0 0.0
    %505 = vmatpush1.msra.mxu0 0.0
    %506 = vmatprep.subr.mxu0 0.0
    %507 = vmatpush1.msra.mxu0 0.0
    %508 = vmatprep.subr.mxu0 0.0
    %509 = vmatpush1.msra.mxu0 0.0
    %510 = vmatprep.subr.mxu0 0.0
    %511 = vmatpush1.msra.mxu0 0.0
    %512 = vmatprep.subr.mxu0 0.0
    %513 = vmatpush1.msra.mxu0 0.0
    %514 = vmatprep.subr.mxu0 0.0
    %515 = vmatpush1.msra.mxu0 0.0
    %516 = vmatprep.subr.mxu0 0.0
    %517 = vmatpush1.msra.mxu0 0.0
    %518 = vmatprep.subr.mxu0 0.0
    %519 = vmatpush1.msra.mxu0 0.0
    %520 = vmatprep.subr.mxu0 0.0
    %521 = vmatpush1.msra.mxu0 0.0
    %522 = vmatprep.subr.mxu0 0.0
    %523 = vmatpush1.msra.mxu0 0.0
    %524 = vmatprep.subr.mxu0 0.0
    %525 = vmatpush1.msra.mxu0 0.0
    %526 = vmatprep.subr.mxu0 0.0
    %527 = vmatpush1.msra.mxu0 0.0
    %528 = vmatprep.subr.mxu0 0.0
    %529 = vmatpush1.msra.mxu0 0.0
    %530 = vmatprep.subr.mxu0 0.0
    %531 = vmatpush1.msra.mxu0 0.0
    %532 = vmatprep.subr.mxu0 0.0
    %533 = vmatpush1.msra.mxu0 0.0
    %534 = vmatprep.subr.mxu0 0.0
    %535 = vmatpush1.msra.mxu0 0.0
    %536 = vmatprep.mubr.f32.mxu0 0.0
    %537 = vmatmul.mubr.f32.gmra.mrb[0].mxu0 %v461
    %v538 = vpop.f32.mrb[0].mxu0
    %v539 = vadd.f32 %v442, %v538
    %v540 = vpop.f32.mrb[0].mxu0
    %541 = vmatprep.mubr.f32.mxu0 0.0
    %542 = vmatmul.mubr.f32.gmra.mrb[0].mxu0 %v464
    %v543 = vpop.f32.mrb[0].mxu0
    %v544 = vadd.f32 %v447, %v543
    %v545 = vpop.f32.mrb[0].mxu0
    %546 = vmatprep.mubr.f32.mxu0 0.0
    %547 = vmatmul.mubr.f32.gmra.mrb[0].mxu0 %v467
    %v548 = vpop.f32.mrb[0].mxu0
    %v549 = vadd.f32 %v452, %v548
    %v550 = vpop.f32.mrb[0].mxu0
    %551 = vmatprep.mubr.f32.mxu0 0.0
    %552 = vmatmul.mubr.f32.gmra.mrb[0].mxu0 %v470
    %v553 = vpop.f32.mrb[0].mxu0
    %v554 = vadd.f32 %v457, %v553
    %v555 = vpop.f32.mrb[0].mxu0
    %556 = vdwg.mxu0
    %s557 = scalar_lea.vmem [#allocation5], 128
    %v558 = vld [vmem:[%s557] sm:$0xff]
    %v559 = vld [vmem:[%s557 + $0x8] sm:$0xff]
    %v560 = vld [vmem:[%s557 + $0x10] sm:$0xff]
    %v561 = vld [vmem:[%s557 + $0x18] sm:$0xff]
    %v562 = vld [vmem:[%s557 + $0x20] sm:$0xff]
    %v563 = vld [vmem:[%s557 + $0x28] sm:$0xff]
    %v564 = vld [vmem:[%s557 + $0x30] sm:$0xff]
    %v565 = vld [vmem:[%s557 + $0x38] sm:$0xff]
    %v567 = vsel %vm362, %v327, 0
    %v570 = vsel %vm362, %v332, 0
    %v573 = vsel %vm362, %v337, 0
    %v576 = vsel %vm362, %v342, 0
    %578 = vmatprep.subr.mxu0 0.0
    %579 = vmatpush1.msra.mxu0 %v558
    %580 = vmatprep.subr.mxu0 0.0
    %581 = vmatpush1.msra.mxu0 %v559
    %582 = vmatprep.subr.mxu0 0.0
    %583 = vmatpush1.msra.mxu0 %v560
    %584 = vmatprep.subr.mxu0 0.0
    %585 = vmatpush1.msra.mxu0 %v561
    %586 = vmatprep.subr.mxu0 0.0
    %587 = vmatpush1.msra.mxu0 %v562
    %588 = vmatprep.subr.mxu0 0.0
    %589 = vmatpush1.msra.mxu0 %v563
    %590 = vmatprep.subr.mxu0 0.0
    %591 = vmatpush1.msra.mxu0 %v564
    %592 = vmatprep.subr.mxu0 0.0
    %593 = vmatpush1.msra.mxu0 %v565
    %594 = vmatprep.subr.mxu0 0.0
    %595 = vmatpush1.msra.mxu0 0.0
    %596 = vmatprep.subr.mxu0 0.0
    %597 = vmatpush1.msra.mxu0 0.0
    %598 = vmatprep.subr.mxu0 0.0
    %599 = vmatpush1.msra.mxu0 0.0
    %600 = vmatprep.subr.mxu0 0.0
    %601 = vmatpush1.msra.mxu0 0.0
    %602 = vmatprep.subr.mxu0 0.0
    %603 = vmatpush1.msra.mxu0 0.0
    %604 = vmatprep.subr.mxu0 0.0
    %605 = vmatpush1.msra.mxu0 0.0
    %606 = vmatprep.subr.mxu0 0.0
    %607 = vmatpush1.msra.mxu0 0.0
    %608 = vmatprep.subr.mxu0 0.0
    %609 = vmatpush1.msra.mxu0 0.0
    %610 = vmatprep.subr.mxu0 0.0
    %611 = vmatpush1.msra.mxu0 0.0
    %612 = vmatprep.subr.mxu0 0.0
    %613 = vmatpush1.msra.mxu0 0.0
    %614 = vmatprep.subr.mxu0 0.0
    %615 = vmatpush1.msra.mxu0 0.0
    %616 = vmatprep.subr.mxu0 0.0
    %617 = vmatpush1.msra.mxu0 0.0
    %618 = vmatprep.subr.mxu0 0.0
    %619 = vmatpush1.msra.mxu0 0.0
    %620 = vmatprep.subr.mxu0 0.0
    %621 = vmatpush1.msra.mxu0 0.0
    %622 = vmatprep.subr.mxu0 0.0
    %623 = vmatpush1.msra.mxu0 0.0
    %624 = vmatprep.subr.mxu0 0.0
    %625 = vmatpush1.msra.mxu0 0.0
    %626 = vmatprep.subr.mxu0 0.0
    %627 = vmatpush1.msra.mxu0 0.0
    %628 = vmatprep.subr.mxu0 0.0
    %629 = vmatpush1.msra.mxu0 0.0
    %630 = vmatprep.subr.mxu0 0.0
    %631 = vmatpush1.msra.mxu0 0.0
    %632 = vmatprep.subr.mxu0 0.0
    %633 = vmatpush1.msra.mxu0 0.0
    %634 = vmatprep.subr.mxu0 0.0
    %635 = vmatpush1.msra.mxu0 0.0
    %636 = vmatprep.subr.mxu0 0.0
    %637 = vmatpush1.msra.mxu0 0.0
    %638 = vmatprep.subr.mxu0 0.0
    %639 = vmatpush1.msra.mxu0 0.0
    %640 = vmatprep.subr.mxu0 0.0
    %641 = vmatpush1.msra.mxu0 0.0
    %642 = vmatprep.mubr.f32.mxu0 0.0
    %643 = vmatmul.mubr.f32.gmra.mrb[0].mxu0 %v567
    %v644 = vpop.f32.mrb[0].mxu0
    %v645 = vadd.f32 0.0, %v644
    %v646 = vpop.f32.mrb[0].mxu0
    %647 = vmatprep.mubr.f32.mxu0 0.0
    %648 = vmatmul.mubr.f32.gmra.mrb[0].mxu0 %v570
    %v649 = vpop.f32.mrb[0].mxu0
    %v650 = vadd.f32 0.0, %v649
    %v651 = vpop.f32.mrb[0].mxu0
    %652 = vmatprep.mubr.f32.mxu0 0.0
    %653 = vmatmul.mubr.f32.gmra.mrb[0].mxu0 %v573
    %v654 = vpop.f32.mrb[0].mxu0
    %v655 = vadd.f32 0.0, %v654
    %v656 = vpop.f32.mrb[0].mxu0
    %657 = vmatprep.mubr.f32.mxu0 0.0
    %658 = vmatmul.mubr.f32.gmra.mrb[0].mxu0 %v576
    %v659 = vpop.f32.mrb[0].mxu0
    %v660 = vadd.f32 0.0, %v659
    %v661 = vpop.f32.mrb[0].mxu0
    %662 = vdwg.mxu0
    %v663 = vadd.f32 %v539, %v645
    %v664 = vadd.f32 %v544, %v650
    %v665 = vadd.f32 %v549, %v655
    %v666 = vadd.f32 %v554, %v660
    %v667 = vadd.f32 %v663, %v664
    %v668 = vadd.f32 %v667, %v665
    %v669 = vadd.f32 %v668, %v666
    %v670 = vrot.slane %v669, 4
    %v671 = vadd.f32 %v669, %v670
    %v672 = vrot.slane %v671, 2
    %v673 = vadd.f32 %v671, %v672
    %v674 = vrot.slane %v673, 1
    %v675 = vadd.f32 %v673, %v674
    %v676 = vmul.f32 %v663, %v663
    %v677 = vmul.f32 %v664, %v664
    %v678 = vmul.f32 %v665, %v665
    %v679 = vmul.f32 %v666, %v666
    %v680 = vadd.f32 %v676, %v677
    %v681 = vadd.f32 %v680, %v678
    %v682 = vadd.f32 %v681, %v679
    %v683 = vrot.slane %v682, 4
    %v684 = vadd.f32 %v682, %v683
    %v685 = vrot.slane %v684, 2
    %v686 = vadd.f32 %v684, %v685
    %v687 = vrot.slane %v686, 1
    %v688 = vadd.f32 %v686, %v687
    %vm689 = vcmask 1040384
    %v690 = vsel %vm689, %v675, %v688
    %691 = vmatprep.subr.mxu0 0.0
    %692 = vmatpush1.msra.mxu0 %v116
    %693 = vmatprep.subr.mxu0 0.0
    %694 = vmatpush1.msra.mxu0 %v117
    %695 = vmatprep.subr.mxu0 0.0
    %696 = vmatpush1.msra.mxu0 %v118
    %697 = vmatprep.subr.mxu0 0.0
    %698 = vmatpush1.msra.mxu0 %v119
    %699 = vmatprep.subr.mxu0 0.0
    %700 = vmatpush1.msra.mxu0 %v120
    %701 = vmatprep.subr.mxu0 0.0
    %702 = vmatpush1.msra.mxu0 %v121
    %703 = vmatprep.subr.mxu0 0.0
    %704 = vmatpush1.msra.mxu0 %v122
    %705 = vmatprep.subr.mxu0 0.0
    %706 = vmatpush1.msra.mxu0 %v123
    %707 = vmatprep.subr.mxu0 0.0
    %708 = vmatpush1.msra.mxu0 %v124
    %709 = vmatprep.subr.mxu0 0.0
    %710 = vmatpush1.msra.mxu0 %v125
    %711 = vmatprep.subr.mxu0 0.0
    %712 = vmatpush1.msra.mxu0 %v126
    %713 = vmatprep.subr.mxu0 0.0
    %714 = vmatpush1.msra.mxu0 %v127
    %715 = vmatprep.subr.mxu0 0.0
    %716 = vmatpush1.msra.mxu0 %v128
    %717 = vmatprep.subr.mxu0 0.0
    %718 = vmatpush1.msra.mxu0 %v129
    %719 = vmatprep.subr.mxu0 0.0
    %720 = vmatpush1.msra.mxu0 %v130
    %721 = vmatprep.subr.mxu0 0.0
    %722 = vmatpush1.msra.mxu0 %v131
    %723 = vmatprep.subr.mxu0 0.0
    %724 = vmatpush1.msra.mxu0 0.0
    %725 = vmatprep.subr.mxu0 0.0
    %726 = vmatpush1.msra.mxu0 0.0
    %727 = vmatprep.subr.mxu0 0.0
    %728 = vmatpush1.msra.mxu0 0.0
    %729 = vmatprep.subr.mxu0 0.0
    %730 = vmatpush1.msra.mxu0 0.0
    %731 = vmatprep.subr.mxu0 0.0
    %732 = vmatpush1.msra.mxu0 0.0
    %733 = vmatprep.subr.mxu0 0.0
    %734 = vmatpush1.msra.mxu0 0.0
    %735 = vmatprep.subr.mxu0 0.0
    %736 = vmatpush1.msra.mxu0 0.0
    %737 = vmatprep.subr.mxu0 0.0
    %738 = vmatpush1.msra.mxu0 0.0
    %739 = vmatprep.subr.mxu0 0.0
    %740 = vmatpush1.msra.mxu0 0.0
    %741 = vmatprep.subr.mxu0 0.0
    %742 = vmatpush1.msra.mxu0 0.0
    %743 = vmatprep.subr.mxu0 0.0
    %744 = vmatpush1.msra.mxu0 0.0
    %745 = vmatprep.subr.mxu0 0.0
    %746 = vmatpush1.msra.mxu0 0.0
    %747 = vmatprep.subr.mxu0 0.0
    %748 = vmatpush1.msra.mxu0 0.0
    %749 = vmatprep.subr.mxu0 0.0
    %750 = vmatpush1.msra.mxu0 0.0
    %751 = vmatprep.subr.mxu0 0.0
    %752 = vmatpush1.msra.mxu0 0.0
    %753 = vmatprep.subr.mxu0 0.0
    %754 = vmatpush1.msra.mxu0 0.0
    %755 = vmatprep.mubr.f32.mxu0 0.0
    %756 = vmatmul.mubr.f32.gmra.mrb[0].mxu0 %v690
    %v757 = vpop.f32.mrb[0].mxu0
    %v758 = vadd.f32 0.0, %v757
    %v759 = vpop.f32.mrb[0].mxu0
    %760 = vdwg.mxu0
    %v761 = vmul.f32 %v758, %v758
    %v763 = vrot.slane %v761, 7
    %v765 = vsub.f32 %v758, %v763
    %v766 = vadd.f32 %v765, 1e-05
    %v767 = vrsqrt.pop %v766
    %v769 = vrot.slane %v115, 7
    %v771 = vmul.f32 %v767, %v769
    %v772 = vlaneseq
    %v773 = vshrl.u32 %v772, 7
    %v774 = vsub.s32 0, %v773
    %v775 = vrot.slane %v758, %v774
    %v776 = vsub.f32 %v663, %v775
    %v777 = vsub.f32 %v664, %v775
    %v778 = vsub.f32 %v665, %v775
    %v779 = vsub.f32 %v666, %v775
    %v780 = vlaneseq
    %v781 = vshrl.u32 %v780, 7
    %v782 = vsub.s32 1, %v781
    %v783 = vrot.slane %v771, %v782
    %v784 = vmul.f32 %v776, %v783
    %v785 = vmul.f32 %v777, %v783
    %v786 = vmul.f32 %v778, %v783
    %v787 = vmul.f32 %v779, %v783
    %v788 = vlaneseq
    %v789 = vshrl.u32 %v788, 7
    %v790 = vsub.s32 1, %v789
    %v791 = vrot.slane %v115, %v790
    %v792 = vadd.f32 %v784, %v791
    %v793 = vadd.f32 %v785, %v791
    %v794 = vadd.f32 %v786, %v791
    %v795 = vadd.f32 %v787, %v791
    %v796 = vmax.f32 %v792, 0.0
    %v797 = vmax.f32 %v793, 0.0
    %v798 = vmax.f32 %v794, 0.0
    %v799 = vmax.f32 %v795, 0.0
    %800 = vmatprep.subr.mxu0 0.0
    %801 = vmatpush1.msra.mxu0 %v796
    %802 = vmatprep.subr.mxu0 0.0
    %803 = vmatpush1.msra.mxu0 %v797
    %804 = vmatprep.subr.mxu0 0.0
    %805 = vmatpush1.msra.mxu0 %v798
    %806 = vmatprep.subr.mxu0 0.0
    %807 = vmatpush1.msra.mxu0 %v799
    %808 = vmatprep.subr.mxu0 0.0
    %809 = vmatpush1.msra.mxu0 0.0
    %810 = vmatprep.subr.mxu0 0.0
    %811 = vmatpush1.msra.mxu0 0.0
    %812 = vmatprep.subr.mxu0 0.0
    %813 = vmatpush1.msra.mxu0 0.0
    %814 = vmatprep.subr.mxu0 0.0
    %815 = vmatpush1.msra.mxu0 0.0
    %816 = vmatprep.subr.mxu0 0.0
    %817 = vmatpush1.msra.mxu0 0.0
    %818 = vmatprep.subr.mxu0 0.0
    %819 = vmatpush1.msra.mxu0 0.0
    %820 = vmatprep.subr.mxu0 0.0
    %821 = vmatpush1.msra.mxu0 0.0
    %822 = vmatprep.subr.mxu0 0.0
    %823 = vmatpush1.msra.mxu0 0.0
    %824 = vmatprep.subr.mxu0 0.0
    %825 = vmatpush1.msra.mxu0 0.0
    %826 = vmatprep.subr.mxu0 0.0
    %827 = vmatpush1.msra.mxu0 0.0
    %828 = vmatprep.subr.mxu0 0.0
    %829 = vmatpush1.msra.mxu0 0.0
    %830 = vmatprep.subr.mxu0 0.0
    %831 = vmatpush1.msra.mxu0 0.0
    %832 = vmatprep.subr.mxu0 0.0
    %833 = vmatpush1.msra.mxu0 0.0
    %834 = vmatprep.subr.mxu0 0.0
    %835 = vmatpush1.msra.mxu0 0.0
    %836 = vmatprep.subr.mxu0 0.0
    %837 = vmatpush1.msra.mxu0 0.0
    %838 = vmatprep.subr.mxu0 0.0
    %839 = vmatpush1.msra.mxu0 0.0
    %840 = vmatprep.subr.mxu0 0.0
    %841 = vmatpush1.msra.mxu0 0.0
    %842 = vmatprep.subr.mxu0 0.0
    %843 = vmatpush1.msra.mxu0 0.0
    %844 = vmatprep.subr.mxu0 0.0
    %845 = vmatpush1.msra.mxu0 0.0
    %846 = vmatprep.subr.mxu0 0.0
    %847 = vmatpush1.msra.mxu0 0.0
    %848 = vmatprep.subr.mxu0 0.0
    %849 = vmatpush1.msra.mxu0 0.0
    %850 = vmatprep.subr.mxu0 0.0
    %851 = vmatpush1.msra.mxu0 0.0
    %852 = vmatprep.subr.mxu0 0.0
    %853 = vmatpush1.msra.mxu0 0.0
    %854 = vmatprep.subr.mxu0 0.0
    %855 = vmatpush1.msra.mxu0 0.0
    %856 = vmatprep.subr.mxu0 0.0
    %857 = vmatpush1.msra.mxu0 0.0
    %858 = vmatprep.subr.mxu0 0.0
    %859 = vmatpush1.msra.mxu0 0.0
    %860 = vmatprep.subr.mxu0 0.0
    %861 = vmatpush1.msra.mxu0 0.0
    %862 = vmatprep.subr.mxu0 0.0
    %863 = vmatpush1.msra.mxu0 0.0
    %864 = vmatprep.mubr.f32.mxu0 0.0
    %865 = vmatmul.mubr.f32.gmra.mrb[0].mxu0 %v152
    %v866 = vpop.f32.mrb[0].mxu0
    %v867 = vadd.f32 0.0, %v866
    %v868 = vpop.f32.mrb[0].mxu0
    %869 = vmatprep.mubr.f32.mxu0 0.0
    %870 = vmatmul.mubr.f32.gmra.mrb[0].mxu0 %v155
    %v871 = vpop.f32.mrb[0].mxu0
    %v872 = vadd.f32 0.0, %v871
    %v873 = vpop.f32.mrb[0].mxu0
    %874 = vmatprep.mubr.f32.mxu0 0.0
    %875 = vmatmul.mubr.f32.gmra.mrb[0].mxu0 %v158
    %v876 = vpop.f32.mrb[0].mxu0
    %v877 = vadd.f32 0.0, %v876
    %v878 = vpop.f32.mrb[0].mxu0
    %879 = vmatprep.mubr.f32.mxu0 0.0
    %880 = vmatmul.mubr.f32.gmra.mrb[0].mxu0 %v161
    %v881 = vpop.f32.mrb[0].mxu0
    %v882 = vadd.f32 0.0, %v881
    %v883 = vpop.f32.mrb[0].mxu0
    %884 = vdwg.mxu0
    %885 = vmatprep.subr.mxu0 0.0
    %886 = vmatpush1.msra.mxu0 %v796
    %887 = vmatprep.subr.mxu0 0.0
    %888 = vmatpush1.msra.mxu0 %v797
    %889 = vmatprep.subr.mxu0 0.0
    %890 = vmatpush1.msra.mxu0 %v798
    %891 = vmatprep.subr.mxu0 0.0
    %892 = vmatpush1.msra.mxu0 %v799
    %893 = vmatprep.subr.mxu0 0.0
    %894 = vmatpush1.msra.mxu0 0.0
    %895 = vmatprep.subr.mxu0 0.0
    %896 = vmatpush1.msra.mxu0 0.0
    %897 = vmatprep.subr.mxu0 0.0
    %898 = vmatpush1.msra.mxu0 0.0
    %899 = vmatprep.subr.mxu0 0.0
    %900 = vmatpush1.msra.mxu0 0.0
    %901 = vmatprep.subr.mxu0 0.0
    %902 = vmatpush1.msra.mxu0 0.0
    %903 = vmatprep.subr.mxu0 0.0
    %904 = vmatpush1.msra.mxu0 0.0
    %905 = vmatprep.subr.mxu0 0.0
    %906 = vmatpush1.msra.mxu0 0.0
    %907 = vmatprep.subr.mxu0 0.0
    %908 = vmatpush1.msra.mxu0 0.0
    %909 = vmatprep.subr.mxu0 0.0
    %910 = vmatpush1.msra.mxu0 0.0
    %911 = vmatprep.subr.mxu0 0.0
    %912 = vmatpush1.msra.mxu0 0.0
    %913 = vmatprep.subr.mxu0 0.0
    %914 = vmatpush1.msra.mxu0 0.0
    %915 = vmatprep.subr.mxu0 0.0
    %916 = vmatpush1.msra.mxu0 0.0
    %917 = vmatprep.subr.mxu0 0.0
    %918 = vmatpush1.msra.mxu0 0.0
    %919 = vmatprep.subr.mxu0 0.0
    %920 = vmatpush1.msra.mxu0 0.0
    %921 = vmatprep.subr.mxu0 0.0
    %922 = vmatpush1.msra.mxu0 0.0
    %923 = vmatprep.subr.mxu0 0.0
    %924 = vmatpush1.msra.mxu0 0.0
    %925 = vmatprep.subr.mxu0 0.0
    %926 = vmatpush1.msra.mxu0 0.0
    %927 = vmatprep.subr.mxu0 0.0
    %928 = vmatpush1.msra.mxu0 0.0
    %929 = vmatprep.subr.mxu0 0.0
    %930 = vmatpush1.msra.mxu0 0.0
    %931 = vmatprep.subr.mxu0 0.0
    %932 = vmatpush1.msra.mxu0 0.0
    %933 = vmatprep.subr.mxu0 0.0
    %934 = vmatpush1.msra.mxu0 0.0
    %935 = vmatprep.subr.mxu0 0.0
    %936 = vmatpush1.msra.mxu0 0.0
    %937 = vmatprep.subr.mxu0 0.0
    %938 = vmatpush1.msra.mxu0 0.0
    %939 = vmatprep.subr.mxu0 0.0
    %940 = vmatpush1.msra.mxu0 0.0
    %941 = vmatprep.subr.mxu0 0.0
    %942 = vmatpush1.msra.mxu0 0.0
    %943 = vmatprep.subr.mxu0 0.0
    %944 = vmatpush1.msra.mxu0 0.0
    %945 = vmatprep.subr.mxu0 0.0
    %946 = vmatpush1.msra.mxu0 0.0
    %947 = vmatprep.subr.mxu0 0.0
    %948 = vmatpush1.msra.mxu0 0.0
    %949 = vmatprep.mubr.f32.mxu0 0.0
    %950 = vmatmul.mubr.f32.gmra.mrb[0].mxu0 %v249
    %v951 = vpop.f32.mrb[0].mxu0
    %v952 = vadd.f32 0.0, %v951
    %v953 = vpop.f32.mrb[0].mxu0
    %954 = vmatprep.mubr.f32.mxu0 0.0
    %955 = vmatmul.mubr.f32.gmra.mrb[0].mxu0 %v252
    %v956 = vpop.f32.mrb[0].mxu0
    %v957 = vadd.f32 0.0, %v956
    %v958 = vpop.f32.mrb[0].mxu0
    %959 = vmatprep.mubr.f32.mxu0 0.0
    %960 = vmatmul.mubr.f32.gmra.mrb[0].mxu0 %v255
    %v961 = vpop.f32.mrb[0].mxu0
    %v962 = vadd.f32 0.0, %v961
    %v963 = vpop.f32.mrb[0].mxu0
    %964 = vmatprep.mubr.f32.mxu0 0.0
    %965 = vmatmul.mubr.f32.gmra.mrb[0].mxu0 %v258
    %v966 = vpop.f32.mrb[0].mxu0
    %v967 = vadd.f32 0.0, %v966
    %v968 = vpop.f32.mrb[0].mxu0
    %969 = vdwg.mxu0
    %v970 = vld [vmem:[#allocation7] sm:$0xff]
    %v971 = vld [vmem:[#allocation7 + $0x8] sm:$0xff]
    %v972 = vld [vmem:[#allocation7 + $0x10] sm:$0xff]
    %v973 = vld [vmem:[#allocation7 + $0x18] sm:$0xff]
    %v974 = vld [vmem:[#allocation7 + $0x20] sm:$0xff]
    %v975 = vld [vmem:[#allocation7 + $0x28] sm:$0xff]
    %v976 = vld [vmem:[#allocation7 + $0x30] sm:$0xff]
    %v977 = vld [vmem:[#allocation7 + $0x38] sm:$0xff]
    %v978 = vld [vmem:[#allocation7 + $0x40] sm:$0xff]
    %v979 = vld [vmem:[#allocation7 + $0x48] sm:$0xff]
    %v980 = vld [vmem:[#allocation7 + $0x50] sm:$0xff]
    %v981 = vld [vmem:[#allocation7 + $0x58] sm:$0xff]
    %v982 = vld [vmem:[#allocation7 + $0x60] sm:$0xff]
    %v983 = vld [vmem:[#allocation7 + $0x68] sm:$0xff]
    %v984 = vld [vmem:[#allocation7 + $0x70] sm:$0xff]
    %v985 = vld [vmem:[#allocation7 + $0x78] sm:$0xff]
    %s986 = scalar_lea.vmem [#allocation7], 128
    %v987 = vld [vmem:[%s986] sm:$0xff]
    %v988 = vld [vmem:[%s986 + $0x8] sm:$0xff]
    %v989 = vld [vmem:[%s986 + $0x10] sm:$0xff]
    %v990 = vld [vmem:[%s986 + $0x18] sm:$0xff]
    %v991 = vld [vmem:[%s986 + $0x20] sm:$0xff]
    %v992 = vld [vmem:[%s986 + $0x28] sm:$0xff]
    %v993 = vld [vmem:[%s986 + $0x30] sm:$0xff]
    %v994 = vld [vmem:[%s986 + $0x38] sm:$0xff]
    %v995 = vld [vmem:[%s986 + $0x40] sm:$0xff]
    %v996 = vld [vmem:[%s986 + $0x48] sm:$0xff]
    %v997 = vld [vmem:[%s986 + $0x50] sm:$0xff]
    %v998 = vld [vmem:[%s986 + $0x58] sm:$0xff]
    %v999 = vld [vmem:[%s986 + $0x60] sm:$0xff]
    %v1000 = vld [vmem:[%s986 + $0x68] sm:$0xff]
    %v1001 = vld [vmem:[%s986 + $0x70] sm:$0xff]
    %v1002 = vld [vmem:[%s986 + $0x78] sm:$0xff]
    %1003 = vmatprep.subr.mxu0 0.0
    %1004 = vmatpush1.msra.mxu0 %v987
    %1005 = vmatprep.subr.mxu0 0.0
    %1006 = vmatpush1.msra.mxu0 %v988
    %1007 = vmatprep.subr.mxu0 0.0
    %1008 = vmatpush1.msra.mxu0 %v989
    %1009 = vmatprep.subr.mxu0 0.0
    %1010 = vmatpush1.msra.mxu0 %v990
    %1011 = vmatprep.subr.mxu0 0.0
    %1012 = vmatpush1.msra.mxu0 %v991
    %1013 = vmatprep.subr.mxu0 0.0
    %1014 = vmatpush1.msra.mxu0 %v992
    %1015 = vmatprep.subr.mxu0 0.0
    %1016 = vmatpush1.msra.mxu0 %v993
    %1017 = vmatprep.subr.mxu0 0.0
    %1018 = vmatpush1.msra.mxu0 %v994
    %1019 = vmatprep.subr.mxu0 0.0
    %1020 = vmatpush1.msra.mxu0 %v995
    %1021 = vmatprep.subr.mxu0 0.0
    %1022 = vmatpush1.msra.mxu0 %v996
    %1023 = vmatprep.subr.mxu0 0.0
    %1024 = vmatpush1.msra.mxu0 %v997
    %1025 = vmatprep.subr.mxu0 0.0
    %1026 = vmatpush1.msra.mxu0 %v998
    %1027 = vmatprep.subr.mxu0 0.0
    %1028 = vmatpush1.msra.mxu0 %v999
    %1029 = vmatprep.subr.mxu0 0.0
    %1030 = vmatpush1.msra.mxu0 %v1000
    %1031 = vmatprep.subr.mxu0 0.0
    %1032 = vmatpush1.msra.mxu0 %v1001
    %1033 = vmatprep.subr.mxu0 0.0
    %1034 = vmatpush1.msra.mxu0 %v1002
    %1035 = vmatprep.subr.mxu0 0.0
    %1036 = vmatpush1.msra.mxu0 0.0
    %1037 = vmatprep.subr.mxu0 0.0
    %1038 = vmatpush1.msra.mxu0 0.0
    %1039 = vmatprep.subr.mxu0 0.0
    %1040 = vmatpush1.msra.mxu0 0.0
    %1041 = vmatprep.subr.mxu0 0.0
    %1042 = vmatpush1.msra.mxu0 0.0
    %1043 = vmatprep.subr.mxu0 0.0
    %1044 = vmatpush1.msra.mxu0 0.0
    %1045 = vmatprep.subr.mxu0 0.0
    %1046 = vmatpush1.msra.mxu0 0.0
    %1047 = vmatprep.subr.mxu0 0.0
    %1048 = vmatpush1.msra.mxu0 0.0
    %1049 = vmatprep.subr.mxu0 0.0
    %1050 = vmatpush1.msra.mxu0 0.0
    %1051 = vmatprep.subr.mxu0 0.0
    %1052 = vmatpush1.msra.mxu0 0.0
    %1053 = vmatprep.subr.mxu0 0.0
    %1054 = vmatpush1.msra.mxu0 0.0
    %1055 = vmatprep.subr.mxu0 0.0
    %1056 = vmatpush1.msra.mxu0 0.0
    %1057 = vmatprep.subr.mxu0 0.0
    %1058 = vmatpush1.msra.mxu0 0.0
    %1059 = vmatprep.subr.mxu0 0.0
    %1060 = vmatpush1.msra.mxu0 0.0
    %1061 = vmatprep.subr.mxu0 0.0
    %1062 = vmatpush1.msra.mxu0 0.0
    %1063 = vmatprep.subr.mxu0 0.0
    %1064 = vmatpush1.msra.mxu0 0.0
    %1065 = vmatprep.subr.mxu0 0.0
    %1066 = vmatpush1.msra.mxu0 0.0
    %1067 = vmatprep.mubr.f32.mxu0 0.0
    %1068 = vmatmul.mubr.f32.gmra.mrb[0].mxu0 %v796
    %v1069 = vpop.f32.mrb[0].mxu0
    %v1070 = vadd.f32 0.0, %v1069
    %v1071 = vpop.f32.mrb[0].mxu0
    %1072 = vmatprep.mubr.f32.mxu0 0.0
    %1073 = vmatmul.mubr.f32.gmra.mrb[0].mxu0 %v797
    %v1074 = vpop.f32.mrb[0].mxu0
    %v1075 = vadd.f32 0.0, %v1074
    %v1076 = vpop.f32.mrb[0].mxu0
    %1077 = vmatprep.mubr.f32.mxu0 0.0
    %1078 = vmatmul.mubr.f32.gmra.mrb[0].mxu0 %v798
    %v1079 = vpop.f32.mrb[0].mxu0
    %v1080 = vadd.f32 0.0, %v1079
    %v1081 = vpop.f32.mrb[0].mxu0
    %1082 = vmatprep.mubr.f32.mxu0 0.0
    %1083 = vmatmul.mubr.f32.gmra.mrb[0].mxu0 %v799
    %v1084 = vpop.f32.mrb[0].mxu0
    %v1085 = vadd.f32 0.0, %v1084
    %v1086 = vpop.f32.mrb[0].mxu0
    %1087 = vdwg.mxu0
    %1088 = vmatprep.subr.mxu0 0.0
    %1089 = vmatpush1.msra.mxu0 %v970
    %1090 = vmatprep.subr.mxu0 0.0
    %1091 = vmatpush1.msra.mxu0 %v971
    %1092 = vmatprep.subr.mxu0 0.0
    %1093 = vmatpush1.msra.mxu0 %v972
    %1094 = vmatprep.subr.mxu0 0.0
    %1095 = vmatpush1.msra.mxu0 %v973
    %1096 = vmatprep.subr.mxu0 0.0
    %1097 = vmatpush1.msra.mxu0 %v974
    %1098 = vmatprep.subr.mxu0 0.0
    %1099 = vmatpush1.msra.mxu0 %v975
    %1100 = vmatprep.subr.mxu0 0.0
    %1101 = vmatpush1.msra.mxu0 %v976
    %1102 = vmatprep.subr.mxu0 0.0
    %1103 = vmatpush1.msra.mxu0 %v977
    %1104 = vmatprep.subr.mxu0 0.0
    %1105 = vmatpush1.msra.mxu0 %v978
    %1106 = vmatprep.subr.mxu0 0.0
    %1107 = vmatpush1.msra.mxu0 %v979
    %1108 = vmatprep.subr.mxu0 0.0
    %1109 = vmatpush1.msra.mxu0 %v980
    %1110 = vmatprep.subr.mxu0 0.0
    %1111 = vmatpush1.msra.mxu0 %v981
    %1112 = vmatprep.subr.mxu0 0.0
    %1113 = vmatpush1.msra.mxu0 %v982
    %1114 = vmatprep.subr.mxu0 0.0
    %1115 = vmatpush1.msra.mxu0 %v983
    %1116 = vmatprep.subr.mxu0 0.0
    %1117 = vmatpush1.msra.mxu0 %v984
    %1118 = vmatprep.subr.mxu0 0.0
    %1119 = vmatpush1.msra.mxu0 %v985
    %1120 = vmatprep.subr.mxu0 0.0
    %1121 = vmatpush1.msra.mxu0 0.0
    %1122 = vmatprep.subr.mxu0 0.0
    %1123 = vmatpush1.msra.mxu0 0.0
    %1124 = vmatprep.subr.mxu0 0.0
    %1125 = vmatpush1.msra.mxu0 0.0
    %1126 = vmatprep.subr.mxu0 0.0
    %1127 = vmatpush1.msra.mxu0 0.0
    %1128 = vmatprep.subr.mxu0 0.0
    %1129 = vmatpush1.msra.mxu0 0.0
    %1130 = vmatprep.subr.mxu0 0.0
    %1131 = vmatpush1.msra.mxu0 0.0
    %1132 = vmatprep.subr.mxu0 0.0
    %1133 = vmatpush1.msra.mxu0 0.0
    %1134 = vmatprep.subr.mxu0 0.0
    %1135 = vmatpush1.msra.mxu0 0.0
    %1136 = vmatprep.subr.mxu0 0.0
    %1137 = vmatpush1.msra.mxu0 0.0
    %1138 = vmatprep.subr.mxu0 0.0
    %1139 = vmatpush1.msra.mxu0 0.0
    %1140 = vmatprep.subr.mxu0 0.0
    %1141 = vmatpush1.msra.mxu0 0.0
    %1142 = vmatprep.subr.mxu0 0.0
    %1143 = vmatpush1.msra.mxu0 0.0
    %1144 = vmatprep.subr.mxu0 0.0
    %1145 = vmatpush1.msra.mxu0 0.0
    %1146 = vmatprep.subr.mxu0 0.0
    %1147 = vmatpush1.msra.mxu0 0.0
    %1148 = vmatprep.subr.mxu0 0.0
    %1149 = vmatpush1.msra.mxu0 0.0
    %1150 = vmatprep.subr.mxu0 0.0
    %1151 = vmatpush1.msra.mxu0 0.0
    %1152 = vmatprep.mubr.f32.mxu0 0.0
    %1153 = vmatmul.mubr.f32.gmra.mrb[0].mxu0 %v867
    %v1154 = vpop.f32.mrb[0].mxu0
    %v1155 = vadd.f32 %v1070, %v1154
    %v1156 = vpop.f32.mrb[0].mxu0
    %1157 = vmatprep.mubr.f32.mxu0 0.0
    %1158 = vmatmul.mubr.f32.gmra.mrb[0].mxu0 %v872
    %v1159 = vpop.f32.mrb[0].mxu0
    %v1160 = vadd.f32 %v1075, %v1159
    %v1161 = vpop.f32.mrb[0].mxu0
    %1162 = vmatprep.mubr.f32.mxu0 0.0
    %1163 = vmatmul.mubr.f32.gmra.mrb[0].mxu0 %v877
    %v1164 = vpop.f32.mrb[0].mxu0
    %v1165 = vadd.f32 %v1080, %v1164
    %v1166 = vpop.f32.mrb[0].mxu0
    %1167 = vmatprep.mubr.f32.mxu0 0.0
    %1168 = vmatmul.mubr.f32.gmra.mrb[0].mxu0 %v882
    %v1169 = vpop.f32.mrb[0].mxu0
    %v1170 = vadd.f32 %v1085, %v1169
    %v1171 = vpop.f32.mrb[0].mxu0
    %1172 = vdwg.mxu0
    %s1173 = scalar_lea.vmem [#allocation7], 256
    %v1174 = vld [vmem:[%s1173] sm:$0xff]
    %v1175 = vld [vmem:[%s1173 + $0x8] sm:$0xff]
    %v1176 = vld [vmem:[%s1173 + $0x10] sm:$0xff]
    %v1177 = vld [vmem:[%s1173 + $0x18] sm:$0xff]
    %v1178 = vld [vmem:[%s1173 + $0x20] sm:$0xff]
    %v1179 = vld [vmem:[%s1173 + $0x28] sm:$0xff]
    %v1180 = vld [vmem:[%s1173 + $0x30] sm:$0xff]
    %v1181 = vld [vmem:[%s1173 + $0x38] sm:$0xff]
    %v1182 = vld [vmem:[%s1173 + $0x40] sm:$0xff]
    %v1183 = vld [vmem:[%s1173 + $0x48] sm:$0xff]
    %v1184 = vld [vmem:[%s1173 + $0x50] sm:$0xff]
    %v1185 = vld [vmem:[%s1173 + $0x58] sm:$0xff]
    %v1186 = vld [vmem:[%s1173 + $0x60] sm:$0xff]
    %v1187 = vld [vmem:[%s1173 + $0x68] sm:$0xff]
    %v1188 = vld [vmem:[%s1173 + $0x70] sm:$0xff]
    %v1189 = vld [vmem:[%s1173 + $0x78] sm:$0xff]
    %1190 = vmatprep.subr.mxu0 0.0
    %1191 = vmatpush1.msra.mxu0 %v1174
    %1192 = vmatprep.subr.mxu0 0.0
    %1193 = vmatpush1.msra.mxu0 %v1175
    %1194 = vmatprep.subr.mxu0 0.0
    %1195 = vmatpush1.msra.mxu0 %v1176
    %1196 = vmatprep.subr.mxu0 0.0
    %1197 = vmatpush1.msra.mxu0 %v1177
    %1198 = vmatprep.subr.mxu0 0.0
    %1199 = vmatpush1.msra.mxu0 %v1178
    %1200 = vmatprep.subr.mxu0 0.0
    %1201 = vmatpush1.msra.mxu0 %v1179
    %1202 = vmatprep.subr.mxu0 0.0
    %1203 = vmatpush1.msra.mxu0 %v1180
    %1204 = vmatprep.subr.mxu0 0.0
    %1205 = vmatpush1.msra.mxu0 %v1181
    %1206 = vmatprep.subr.mxu0 0.0
    %1207 = vmatpush1.msra.mxu0 %v1182
    %1208 = vmatprep.subr.mxu0 0.0
    %1209 = vmatpush1.msra.mxu0 %v1183
    %1210 = vmatprep.subr.mxu0 0.0
    %1211 = vmatpush1.msra.mxu0 %v1184
    %1212 = vmatprep.subr.mxu0 0.0
    %1213 = vmatpush1.msra.mxu0 %v1185
    %1214 = vmatprep.subr.mxu0 0.0
    %1215 = vmatpush1.msra.mxu0 %v1186
    %1216 = vmatprep.subr.mxu0 0.0
    %1217 = vmatpush1.msra.mxu0 %v1187
    %1218 = vmatprep.subr.mxu0 0.0
    %1219 = vmatpush1.msra.mxu0 %v1188
    %1220 = vmatprep.subr.mxu0 0.0
    %1221 = vmatpush1.msra.mxu0 %v1189
    %1222 = vmatprep.subr.mxu0 0.0
    %1223 = vmatpush1.msra.mxu0 0.0
    %1224 = vmatprep.subr.mxu0 0.0
    %1225 = vmatpush1.msra.mxu0 0.0
    %1226 = vmatprep.subr.mxu0 0.0
    %1227 = vmatpush1.msra.mxu0 0.0
    %1228 = vmatprep.subr.mxu0 0.0
    %1229 = vmatpush1.msra.mxu0 0.0
    %1230 = vmatprep.subr.mxu0 0.0
    %1231 = vmatpush1.msra.mxu0 0.0
    %1232 = vmatprep.subr.mxu0 0.0
    %1233 = vmatpush1.msra.mxu0 0.0
    %1234 = vmatprep.subr.mxu0 0.0
    %1235 = vmatpush1.msra.mxu0 0.0
    %1236 = vmatprep.subr.mxu0 0.0
    %1237 = vmatpush1.msra.mxu0 0.0
    %1238 = vmatprep.subr.mxu0 0.0
    %1239 = vmatpush1.msra.mxu0 0.0
    %1240 = vmatprep.subr.mxu0 0.0
    %1241 = vmatpush1.msra.mxu0 0.0
    %1242 = vmatprep.subr.mxu0 0.0
    %1243 = vmatpush1.msra.mxu0 0.0
    %1244 = vmatprep.subr.mxu0 0.0
    %1245 = vmatpush1.msra.mxu0 0.0
    %1246 = vmatprep.subr.mxu0 0.0
    %1247 = vmatpush1.msra.mxu0 0.0
    %1248 = vmatprep.subr.mxu0 0.0
    %1249 = vmatpush1.msra.mxu0 0.0
    %1250 = vmatprep.subr.mxu0 0.0
    %1251 = vmatpush1.msra.mxu0 0.0
    %1252 = vmatprep.subr.mxu0 0.0
    %1253 = vmatpush1.msra.mxu0 0.0
    %1254 = vmatprep.mubr.f32.mxu0 0.0
    %1255 = vmatmul.mubr.f32.gmra.mrb[0].mxu0 %v952
    %v1256 = vpop.f32.mrb[0].mxu0
    %v1257 = vadd.f32 0.0, %v1256
    %v1258 = vpop.f32.mrb[0].mxu0
    %1259 = vmatprep.mubr.f32.mxu0 0.0
    %1260 = vmatmul.mubr.f32.gmra.mrb[0].mxu0 %v957
    %v1261 = vpop.f32.mrb[0].mxu0
    %v1262 = vadd.f32 0.0, %v1261
    %v1263 = vpop.f32.mrb[0].mxu0
    %1264 = vmatprep.mubr.f32.mxu0 0.0
    %1265 = vmatmul.mubr.f32.gmra.mrb[0].mxu0 %v962
    %v1266 = vpop.f32.mrb[0].mxu0
    %v1267 = vadd.f32 0.0, %v1266
    %v1268 = vpop.f32.mrb[0].mxu0
    %1269 = vmatprep.mubr.f32.mxu0 0.0
    %1270 = vmatmul.mubr.f32.gmra.mrb[0].mxu0 %v967
    %v1271 = vpop.f32.mrb[0].mxu0
    %v1272 = vadd.f32 0.0, %v1271
    %v1273 = vpop.f32.mrb[0].mxu0
    %1274 = vdwg.mxu0
    %v1275 = vadd.f32 %v1155, %v1257
    %v1276 = vadd.f32 %v1160, %v1262
    %v1277 = vadd.f32 %v1165, %v1267
    %v1278 = vadd.f32 %v1170, %v1272
    %v1279 = vadd.f32 %v1275, %v1276
    %v1280 = vadd.f32 %v1279, %v1277
    %v1281 = vadd.f32 %v1280, %v1278
    %v1282 = vrot.slane %v1281, 4
    %v1283 = vadd.f32 %v1281, %v1282
    %v1284 = vrot.slane %v1283, 2
    %v1285 = vadd.f32 %v1283, %v1284
    %v1286 = vrot.slane %v1285, 1
    %v1287 = vadd.f32 %v1285, %v1286
    %v1288 = vmul.f32 %v1275, %v1275
    %v1289 = vmul.f32 %v1276, %v1276
    %v1290 = vmul.f32 %v1277, %v1277
    %v1291 = vmul.f32 %v1278, %v1278
    %v1292 = vadd.f32 %v1288, %v1289
    %v1293 = vadd.f32 %v1292, %v1290
    %v1294 = vadd.f32 %v1293, %v1291
    %v1295 = vrot.slane %v1294, 4
    %v1296 = vadd.f32 %v1294, %v1295
    %v1297 = vrot.slane %v1296, 2
    %v1298 = vadd.f32 %v1296, %v1297
    %v1299 = vrot.slane %v1298, 1
    %v1300 = vadd.f32 %v1298, %v1299
    %v1301 = vsel %vm689, %v1287, %v1300
    %1302 = vmatprep.subr.mxu0 0.0
    %1303 = vmatpush1.msra.mxu0 %v116
    %1304 = vmatprep.subr.mxu0 0.0
    %1305 = vmatpush1.msra.mxu0 %v117
    %1306 = vmatprep.subr.mxu0 0.0
    %1307 = vmatpush1.msra.mxu0 %v118
    %1308 = vmatprep.subr.mxu0 0.0
    %1309 = vmatpush1.msra.mxu0 %v119
    %1310 = vmatprep.subr.mxu0 0.0
    %1311 = vmatpush1.msra.mxu0 %v120
    %1312 = vmatprep.subr.mxu0 0.0
    %1313 = vmatpush1.msra.mxu0 %v121
    %1314 = vmatprep.subr.mxu0 0.0
    %1315 = vmatpush1.msra.mxu0 %v122
    %1316 = vmatprep.subr.mxu0 0.0
    %1317 = vmatpush1.msra.mxu0 %v123
    %1318 = vmatprep.subr.mxu0 0.0
    %1319 = vmatpush1.msra.mxu0 %v124
    %1320 = vmatprep.subr.mxu0 0.0
    %1321 = vmatpush1.msra.mxu0 %v125
    %1322 = vmatprep.subr.mxu0 0.0
    %1323 = vmatpush1.msra.mxu0 %v126
    %1324 = vmatprep.subr.mxu0 0.0
    %1325 = vmatpush1.msra.mxu0 %v127
    %1326 = vmatprep.subr.mxu0 0.0
    %1327 = vmatpush1.msra.mxu0 %v128
    %1328 = vmatprep.subr.mxu0 0.0
    %1329 = vmatpush1.msra.mxu0 %v129
    %1330 = vmatprep.subr.mxu0 0.0
    %1331 = vmatpush1.msra.mxu0 %v130
    %1332 = vmatprep.subr.mxu0 0.0
    %1333 = vmatpush1.msra.mxu0 %v131
    %1334 = vmatprep.subr.mxu0 0.0
    %1335 = vmatpush1.msra.mxu0 0.0
    %1336 = vmatprep.subr.mxu0 0.0
    %1337 = vmatpush1.msra.mxu0 0.0
    %1338 = vmatprep.subr.mxu0 0.0
    %1339 = vmatpush1.msra.mxu0 0.0
    %1340 = vmatprep.subr.mxu0 0.0
    %1341 = vmatpush1.msra.mxu0 0.0
    %1342 = vmatprep.subr.mxu0 0.0
    %1343 = vmatpush1.msra.mxu0 0.0
    %1344 = vmatprep.subr.mxu0 0.0
    %1345 = vmatpush1.msra.mxu0 0.0
    %1346 = vmatprep.subr.mxu0 0.0
    %1347 = vmatpush1.msra.mxu0 0.0
    %1348 = vmatprep.subr.mxu0 0.0
    %1349 = vmatpush1.msra.mxu0 0.0
    %1350 = vmatprep.subr.mxu0 0.0
    %1351 = vmatpush1.msra.mxu0 0.0
    %1352 = vmatprep.subr.mxu0 0.0
    %1353 = vmatpush1.msra.mxu0 0.0
    %1354 = vmatprep.subr.mxu0 0.0
    %1355 = vmatpush1.msra.mxu0 0.0
    %1356 = vmatprep.subr.mxu0 0.0
    %1357 = vmatpush1.msra.mxu0 0.0
    %1358 = vmatprep.subr.mxu0 0.0
    %1359 = vmatpush1.msra.mxu0 0.0
    %1360 = vmatprep.subr.mxu0 0.0
    %1361 = vmatpush1.msra.mxu0 0.0
    %1362 = vmatprep.subr.mxu0 0.0
    %1363 = vmatpush1.msra.mxu0 0.0
    %1364 = vmatprep.subr.mxu0 0.0
    %1365 = vmatpush1.msra.mxu0 0.0
    %1366 = vmatprep.mubr.f32.mxu0 0.0
    %1367 = vmatmul.mubr.f32.gmra.mrb[0].mxu0 %v1301
    %v1368 = vpop.f32.mrb[0].mxu0
    %v1369 = vadd.f32 0.0, %v1368
    %v1370 = vpop.f32.mrb[0].mxu0
    %1371 = vdwg.mxu0
    %v1372 = vmul.f32 %v1369, %v1369
    %v1374 = vrot.slane %v1372, 7
    %v1376 = vsub.f32 %v1369, %v1374
    %v1377 = vadd.f32 %v1376, 1e-05
    %v1378 = vrsqrt.pop %v1377
    %v1379 = vrot.slane %v115, 1
    %v1381 = vmul.f32 %v1378, %v1379
    %v1382 = vlaneseq
    %v1383 = vshrl.u32 %v1382, 7
    %v1384 = vsub.s32 0, %v1383
    %v1385 = vrot.slane %v1369, %v1384
    %v1386 = vsub.f32 %v1275, %v1385
    %v1387 = vsub.f32 %v1276, %v1385
    %v1388 = vsub.f32 %v1277, %v1385
    %v1389 = vsub.f32 %v1278, %v1385
    %v1390 = vlaneseq
    %v1391 = vshrl.u32 %v1390, 7
    %v1392 = vsub.s32 1, %v1391
    %v1393 = vrot.slane %v1381, %v1392
    %v1394 = vmul.f32 %v1386, %v1393
    %v1395 = vmul.f32 %v1387, %v1393
    %v1396 = vmul.f32 %v1388, %v1393
    %v1397 = vmul.f32 %v1389, %v1393
    %v1398 = vlaneseq
    %v1399 = vshrl.u32 %v1398, 7
    %v1400 = vsub.s32 3, %v1399
    %v1401 = vrot.slane %v115, %v1400
    %v1402 = vadd.f32 %v1394, %v1401
    %v1403 = vadd.f32 %v1395, %v1401
    %v1404 = vadd.f32 %v1396, %v1401
    %v1405 = vadd.f32 %v1397, %v1401
    %v1406 = vmax.f32 %v1402, 0.0
    %v1407 = vmax.f32 %v1403, 0.0
    %v1408 = vmax.f32 %v1404, 0.0
    %v1409 = vmax.f32 %v1405, 0.0
    %1410 = vst [vmem:[#allocation14] sm:$0xff] %v1406
    %1411 = vst [vmem:[#allocation14 + $0x8] sm:$0xff] %v1407
    %1412 = vst [vmem:[#allocation14 + $0x10] sm:$0xff] %v1408
    %1413 = vst [vmem:[#allocation14 + $0x18] sm:$0xff] %v1409
    %v1414 = vld [vmem:[#allocation11] sm:$0xff]
    %v1415 = vld [vmem:[#allocation11 + $0x8] sm:$0xff]
    %v1416 = vld [vmem:[#allocation11 + $0x10] sm:$0xff]
    %v1417 = vld [vmem:[#allocation11 + $0x18] sm:$0xff]
    %v1418 = vld [vmem:[#allocation11 + $0x20] sm:$0xff]
    %v1419 = vld [vmem:[#allocation11 + $0x28] sm:$0xff]
    %v1420 = vld [vmem:[#allocation11 + $0x30] sm:$0xff]
    %v1421 = vld [vmem:[#allocation11 + $0x38] sm:$0xff]
    %v1422 = vld [vmem:[#allocation11 + $0x40] sm:$0xff]
    %v1423 = vld [vmem:[#allocation11 + $0x48] sm:$0xff]
    %v1424 = vld [vmem:[#allocation11 + $0x50] sm:$0xff]
    %v1425 = vld [vmem:[#allocation11 + $0x58] sm:$0xff]
    %v1426 = vld [vmem:[#allocation11 + $0x60] sm:$0xff]
    %v1427 = vld [vmem:[#allocation11 + $0x68] sm:$0xff]
    %v1428 = vld [vmem:[#allocation11 + $0x70] sm:$0xff]
    %v1429 = vld [vmem:[#allocation11 + $0x78] sm:$0xff]
    %1430 = vmatprep.subr.mxu0 0.0
    %1431 = vmatpush1.msra.mxu0 %v1414
    %1432 = vmatprep.subr.mxu0 0.0
    %1433 = vmatpush1.msra.mxu0 %v1415
    %1434 = vmatprep.subr.mxu0 0.0
    %1435 = vmatpush1.msra.mxu0 %v1416
    %1436 = vmatprep.subr.mxu0 0.0
    %1437 = vmatpush1.msra.mxu0 %v1417
    %1438 = vmatprep.subr.mxu0 0.0
    %1439 = vmatpush1.msra.mxu0 %v1418
    %1440 = vmatprep.subr.mxu0 0.0
    %1441 = vmatpush1.msra.mxu0 %v1419
    %1442 = vmatprep.subr.mxu0 0.0
    %1443 = vmatpush1.msra.mxu0 %v1420
    %1444 = vmatprep.subr.mxu0 0.0
    %1445 = vmatpush1.msra.mxu0 %v1421
    %1446 = vmatprep.subr.mxu0 0.0
    %1447 = vmatpush1.msra.mxu0 %v1422
    %1448 = vmatprep.subr.mxu0 0.0
    %1449 = vmatpush1.msra.mxu0 %v1423
    %1450 = vmatprep.subr.mxu0 0.0
    %1451 = vmatpush1.msra.mxu0 %v1424
    %1452 = vmatprep.subr.mxu0 0.0
    %1453 = vmatpush1.msra.mxu0 %v1425
    %1454 = vmatprep.subr.mxu0 0.0
    %1455 = vmatpush1.msra.mxu0 %v1426
    %1456 = vmatprep.subr.mxu0 0.0
    %1457 = vmatpush1.msra.mxu0 %v1427
    %1458 = vmatprep.subr.mxu0 0.0
    %1459 = vmatpush1.msra.mxu0 %v1428
    %1460 = vmatprep.subr.mxu0 0.0
    %1461 = vmatpush1.msra.mxu0 %v1429
    %1462 = vmatprep.subr.mxu0 0.0
    %1463 = vmatpush1.msra.mxu0 0.0
    %1464 = vmatprep.subr.mxu0 0.0
    %1465 = vmatpush1.msra.mxu0 0.0
    %1466 = vmatprep.subr.mxu0 0.0
    %1467 = vmatpush1.msra.mxu0 0.0
    %1468 = vmatprep.subr.mxu0 0.0
    %1469 = vmatpush1.msra.mxu0 0.0
    %1470 = vmatprep.subr.mxu0 0.0
    %1471 = vmatpush1.msra.mxu0 0.0
    %1472 = vmatprep.subr.mxu0 0.0
    %1473 = vmatpush1.msra.mxu0 0.0
    %1474 = vmatprep.subr.mxu0 0.0
    %1475 = vmatpush1.msra.mxu0 0.0
    %1476 = vmatprep.subr.mxu0 0.0
    %1477 = vmatpush1.msra.mxu0 0.0
    %1478 = vmatprep.subr.mxu0 0.0
    %1479 = vmatpush1.msra.mxu0 0.0
    %1480 = vmatprep.subr.mxu0 0.0
    %1481 = vmatpush1.msra.mxu0 0.0
    %1482 = vmatprep.subr.mxu0 0.0
    %1483 = vmatpush1.msra.mxu0 0.0
    %1484 = vmatprep.subr.mxu0 0.0
    %1485 = vmatpush1.msra.mxu0 0.0
    %1486 = vmatprep.subr.mxu0 0.0
    %1487 = vmatpush1.msra.mxu0 0.0
    %1488 = vmatprep.subr.mxu0 0.0
    %1489 = vmatpush1.msra.mxu0 0.0
    %1490 = vmatprep.subr.mxu0 0.0
    %1491 = vmatpush1.msra.mxu0 0.0
    %1492 = vmatprep.subr.mxu0 0.0
    %1493 = vmatpush1.msra.mxu0 0.0
    %1494 = vmatprep.mubr.f32.mxu0 0.0
    %1495 = vmatmul.mubr.f32.gmra.mrb[0].mxu0 %v1406
    %v1496 = vpop.f32.mrb[0].mxu0
    %v1497 = vadd.f32 0.0, %v1496
    %v1498 = vpop.f32.mrb[0].mxu0
    %1499 = vmatprep.mubr.f32.mxu0 0.0
    %1500 = vmatmul.mubr.f32.gmra.mrb[0].mxu0 %v1407
    %v1501 = vpop.f32.mrb[0].mxu0
    %v1502 = vadd.f32 0.0, %v1501
    %v1503 = vpop.f32.mrb[0].mxu0
    %1504 = vmatprep.mubr.f32.mxu0 0.0
    %1505 = vmatmul.mubr.f32.gmra.mrb[0].mxu0 %v1408
    %v1506 = vpop.f32.mrb[0].mxu0
    %v1507 = vadd.f32 0.0, %v1506
    %v1508 = vpop.f32.mrb[0].mxu0
    %1509 = vmatprep.mubr.f32.mxu0 0.0
    %1510 = vmatmul.mubr.f32.gmra.mrb[0].mxu0 %v1409
    %v1511 = vpop.f32.mrb[0].mxu0
    %v1512 = vadd.f32 0.0, %v1511
    %v1513 = vpop.f32.mrb[0].mxu0
    %1514 = vdwg.mxu0
    %s1515 = scalar_lea.vmem [#allocation11], 128
    %v1516 = vld [vmem:[%s1515] sm:$0xff]
    %v1517 = vld [vmem:[%s1515 + $0x8] sm:$0xff]
    %v1518 = vld [vmem:[%s1515 + $0x10] sm:$0xff]
    %v1519 = vld [vmem:[%s1515 + $0x18] sm:$0xff]
    %v1520 = vld [vmem:[%s1515 + $0x20] sm:$0xff]
    %v1521 = vld [vmem:[%s1515 + $0x28] sm:$0xff]
    %v1522 = vld [vmem:[%s1515 + $0x30] sm:$0xff]
    %v1523 = vld [vmem:[%s1515 + $0x38] sm:$0xff]
    %v1524 = vld [vmem:[%s1515 + $0x40] sm:$0xff]
    %v1525 = vld [vmem:[%s1515 + $0x48] sm:$0xff]
    %v1526 = vld [vmem:[%s1515 + $0x50] sm:$0xff]
    %v1527 = vld [vmem:[%s1515 + $0x58] sm:$0xff]
    %v1528 = vld [vmem:[%s1515 + $0x60] sm:$0xff]
    %v1529 = vld [vmem:[%s1515 + $0x68] sm:$0xff]
    %v1530 = vld [vmem:[%s1515 + $0x70] sm:$0xff]
    %v1531 = vld [vmem:[%s1515 + $0x78] sm:$0xff]
    %1532 = vmatprep.subr.mxu0 0.0
    %1533 = vmatpush1.msra.mxu0 %v1516
    %1534 = vmatprep.subr.mxu0 0.0
    %1535 = vmatpush1.msra.mxu0 %v1517
    %1536 = vmatprep.subr.mxu0 0.0
    %1537 = vmatpush1.msra.mxu0 %v1518
    %1538 = vmatprep.subr.mxu0 0.0
    %1539 = vmatpush1.msra.mxu0 %v1519
    %1540 = vmatprep.subr.mxu0 0.0
    %1541 = vmatpush1.msra.mxu0 %v1520
    %1542 = vmatprep.subr.mxu0 0.0
    %1543 = vmatpush1.msra.mxu0 %v1521
    %1544 = vmatprep.subr.mxu0 0.0
    %1545 = vmatpush1.msra.mxu0 %v1522
    %1546 = vmatprep.subr.mxu0 0.0
    %1547 = vmatpush1.msra.mxu0 %v1523
    %1548 = vmatprep.subr.mxu0 0.0
    %1549 = vmatpush1.msra.mxu0 %v1524
    %1550 = vmatprep.subr.mxu0 0.0
    %1551 = vmatpush1.msra.mxu0 %v1525
    %1552 = vmatprep.subr.mxu0 0.0
    %1553 = vmatpush1.msra.mxu0 %v1526
    %1554 = vmatprep.subr.mxu0 0.0
    %1555 = vmatpush1.msra.mxu0 %v1527
    %1556 = vmatprep.subr.mxu0 0.0
    %1557 = vmatpush1.msra.mxu0 %v1528
    %1558 = vmatprep.subr.mxu0 0.0
    %1559 = vmatpush1.msra.mxu0 %v1529
    %1560 = vmatprep.subr.mxu0 0.0
    %1561 = vmatpush1.msra.mxu0 %v1530
    %1562 = vmatprep.subr.mxu0 0.0
    %1563 = vmatpush1.msra.mxu0 %v1531
    %1564 = vmatprep.subr.mxu0 0.0
    %1565 = vmatpush1.msra.mxu0 0.0
    %1566 = vmatprep.subr.mxu0 0.0
    %1567 = vmatpush1.msra.mxu0 0.0
    %1568 = vmatprep.subr.mxu0 0.0
    %1569 = vmatpush1.msra.mxu0 0.0
    %1570 = vmatprep.subr.mxu0 0.0
    %1571 = vmatpush1.msra.mxu0 0.0
    %1572 = vmatprep.subr.mxu0 0.0
    %1573 = vmatpush1.msra.mxu0 0.0
    %1574 = vmatprep.subr.mxu0 0.0
    %1575 = vmatpush1.msra.mxu0 0.0
    %1576 = vmatprep.subr.mxu0 0.0
    %1577 = vmatpush1.msra.mxu0 0.0
    %1578 = vmatprep.subr.mxu0 0.0
    %1579 = vmatpush1.msra.mxu0 0.0
    %1580 = vmatprep.subr.mxu0 0.0
    %1581 = vmatpush1.msra.mxu0 0.0
    %1582 = vmatprep.subr.mxu0 0.0
    %1583 = vmatpush1.msra.mxu0 0.0
    %1584 = vmatprep.subr.mxu0 0.0
    %1585 = vmatpush1.msra.mxu0 0.0
    %1586 = vmatprep.subr.mxu0 0.0
    %1587 = vmatpush1.msra.mxu0 0.0
    %1588 = vmatprep.subr.mxu0 0.0
    %1589 = vmatpush1.msra.mxu0 0.0
    %1590 = vmatprep.subr.mxu0 0.0
    %1591 = vmatpush1.msra.mxu0 0.0
    %1592 = vmatprep.subr.mxu0 0.0
    %1593 = vmatpush1.msra.mxu0 0.0
    %1594 = vmatprep.subr.mxu0 0.0
    %1595 = vmatpush1.msra.mxu0 0.0
    %1596 = vmatprep.mubr.f32.mxu0 0.0
    %1597 = vmatmul.mubr.f32.gmra.mrb[0].mxu0 %v1406
    %v1598 = vpop.f32.mrb[0].mxu0
    %v1599 = vadd.f32 0.0, %v1598
    %v1600 = vpop.f32.mrb[0].mxu0
    %1601 = vmatprep.mubr.f32.mxu0 0.0
    %1602 = vmatmul.mubr.f32.gmra.mrb[0].mxu0 %v1407
    %v1603 = vpop.f32.mrb[0].mxu0
    %v1604 = vadd.f32 0.0, %v1603
    %v1605 = vpop.f32.mrb[0].mxu0
    %1606 = vmatprep.mubr.f32.mxu0 0.0
    %1607 = vmatmul.mubr.f32.gmra.mrb[0].mxu0 %v1408
    %v1608 = vpop.f32.mrb[0].mxu0
    %v1609 = vadd.f32 0.0, %v1608
    %v1610 = vpop.f32.mrb[0].mxu0
    %1611 = vmatprep.mubr.f32.mxu0 0.0
    %1612 = vmatmul.mubr.f32.gmra.mrb[0].mxu0 %v1409
    %v1613 = vpop.f32.mrb[0].mxu0
    %v1614 = vadd.f32 0.0, %v1613
    %v1615 = vpop.f32.mrb[0].mxu0
    %1616 = vdwg.mxu0
    %v1617 = vmax.f32 %v1497, %v1599
    %v1618 = vmax.f32 %v1502, %v1604
    %v1619 = vmax.f32 %v1507, %v1609
    %v1620 = vmax.f32 %v1512, %v1614
    %v1622 = vsel %vm150, %v142, 0
    %v1625 = vsel %vm150, %v143, 0
    %v1628 = vsel %vm150, %v144, 0
    %v1631 = vsel %vm150, %v145, 0
    %1633 = vmatprep.subr.mxu0 0.0
    %1634 = vmatpush1.msra.mxu0 %v1617
    %1635 = vmatprep.subr.mxu0 0.0
    %1636 = vmatpush1.msra.mxu0 %v1618
    %1637 = vmatprep.subr.mxu0 0.0
    %1638 = vmatpush1.msra.mxu0 %v1619
    %1639 = vmatprep.subr.mxu0 0.0
    %1640 = vmatpush1.msra.mxu0 %v1620
    %1641 = vmatprep.subr.mxu0 0.0
    %1642 = vmatpush1.msra.mxu0 0.0
    %1643 = vmatprep.subr.mxu0 0.0
    %1644 = vmatpush1.msra.mxu0 0.0
    %1645 = vmatprep.subr.mxu0 0.0
    %1646 = vmatpush1.msra.mxu0 0.0
    %1647 = vmatprep.subr.mxu0 0.0
    %1648 = vmatpush1.msra.mxu0 0.0
    %1649 = vmatprep.subr.mxu0 0.0
    %1650 = vmatpush1.msra.mxu0 0.0
    %1651 = vmatprep.subr.mxu0 0.0
    %1652 = vmatpush1.msra.mxu0 0.0
    %1653 = vmatprep.subr.mxu0 0.0
    %1654 = vmatpush1.msra.mxu0 0.0
    %1655 = vmatprep.subr.mxu0 0.0
    %1656 = vmatpush1.msra.mxu0 0.0
    %1657 = vmatprep.subr.mxu0 0.0
    %1658 = vmatpush1.msra.mxu0 0.0
    %1659 = vmatprep.subr.mxu0 0.0
    %1660 = vmatpush1.msra.mxu0 0.0
    %1661 = vmatprep.subr.mxu0 0.0
    %1662 = vmatpush1.msra.mxu0 0.0
    %1663 = vmatprep.subr.mxu0 0.0
    %1664 = vmatpush1.msra.mxu0 0.0
    %1665 = vmatprep.subr.mxu0 0.0
    %1666 = vmatpush1.msra.mxu0 0.0
    %1667 = vmatprep.subr.mxu0 0.0
    %1668 = vmatpush1.msra.mxu0 0.0
    %1669 = vmatprep.subr.mxu0 0.0
    %1670 = vmatpush1.msra.mxu0 0.0
    %1671 = vmatprep.subr.mxu0 0.0
    %1672 = vmatpush1.msra.mxu0 0.0
    %1673 = vmatprep.subr.mxu0 0.0
    %1674 = vmatpush1.msra.mxu0 0.0
    %1675 = vmatprep.subr.mxu0 0.0
    %1676 = vmatpush1.msra.mxu0 0.0
    %1677 = vmatprep.subr.mxu0 0.0
    %1678 = vmatpush1.msra.mxu0 0.0
    %1679 = vmatprep.subr.mxu0 0.0
    %1680 = vmatpush1.msra.mxu0 0.0
    %1681 = vmatprep.subr.mxu0 0.0
    %1682 = vmatpush1.msra.mxu0 0.0
    %1683 = vmatprep.subr.mxu0 0.0
    %1684 = vmatpush1.msra.mxu0 0.0
    %1685 = vmatprep.subr.mxu0 0.0
    %1686 = vmatpush1.msra.mxu0 0.0
    %1687 = vmatprep.subr.mxu0 0.0
    %1688 = vmatpush1.msra.mxu0 0.0
    %1689 = vmatprep.subr.mxu0 0.0
    %1690 = vmatpush1.msra.mxu0 0.0
    %1691 = vmatprep.subr.mxu0 0.0
    %1692 = vmatpush1.msra.mxu0 0.0
    %1693 = vmatprep.subr.mxu0 0.0
    %1694 = vmatpush1.msra.mxu0 0.0
    %1695 = vmatprep.subr.mxu0 0.0
    %1696 = vmatpush1.msra.mxu0 0.0
    %1697 = vmatprep.mubr.f32.mxu0 0.0
    %1698 = vmatmul.mubr.f32.gmra.mrb[0].mxu0 %v1622
    %v1699 = vpop.f32.mrb[0].mxu0
    %v1700 = vadd.f32 0.0, %v1699
    %v1701 = vpop.f32.mrb[0].mxu0
    %1702 = vmatprep.mubr.f32.mxu0 0.0
    %1703 = vmatmul.mubr.f32.gmra.mrb[0].mxu0 %v1625
    %v1704 = vpop.f32.mrb[0].mxu0
    %v1705 = vadd.f32 0.0, %v1704
    %v1706 = vpop.f32.mrb[0].mxu0
    %1707 = vmatprep.mubr.f32.mxu0 0.0
    %1708 = vmatmul.mubr.f32.gmra.mrb[0].mxu0 %v1628
    %v1709 = vpop.f32.mrb[0].mxu0
    %v1710 = vadd.f32 0.0, %v1709
    %v1711 = vpop.f32.mrb[0].mxu0
    %1712 = vmatprep.mubr.f32.mxu0 0.0
    %1713 = vmatmul.mubr.f32.gmra.mrb[0].mxu0 %v1631
    %v1714 = vpop.f32.mrb[0].mxu0
    %v1715 = vadd.f32 0.0, %v1714
    %v1716 = vpop.f32.mrb[0].mxu0
    %1717 = vdwg.mxu0
    %v1718 = vmax.f32 %v1617, %v1700
    %v1719 = vmax.f32 %v1618, %v1705
    %v1720 = vmax.f32 %v1619, %v1710
    %v1721 = vmax.f32 %v1620, %v1715
    %v1722 = vld [vmem:[%s7] sm:$0xff]
    %v1724 = vsel %vm150, %v1722, 0
    %1726 = vmatprep.subr.mxu0 0.0
    %1727 = vmatpush1.msra.mxu0 %v1718
    %1728 = vmatprep.subr.mxu0 0.0
    %1729 = vmatpush1.msra.mxu0 %v1719
    %1730 = vmatprep.subr.mxu0 0.0
    %1731 = vmatpush1.msra.mxu0 %v1720
    %1732 = vmatprep.subr.mxu0 0.0
    %1733 = vmatpush1.msra.mxu0 %v1721
    %1734 = vmatprep.subr.mxu0 0.0
    %1735 = vmatpush1.msra.mxu0 0.0
    %1736 = vmatprep.subr.mxu0 0.0
    %1737 = vmatpush1.msra.mxu0 0.0
    %1738 = vmatprep.subr.mxu0 0.0
    %1739 = vmatpush1.msra.mxu0 0.0
    %1740 = vmatprep.subr.mxu0 0.0
    %1741 = vmatpush1.msra.mxu0 0.0
    %1742 = vmatprep.subr.mxu0 0.0
    %1743 = vmatpush1.msra.mxu0 0.0
    %1744 = vmatprep.subr.mxu0 0.0
    %1745 = vmatpush1.msra.mxu0 0.0
    %1746 = vmatprep.subr.mxu0 0.0
    %1747 = vmatpush1.msra.mxu0 0.0
    %1748 = vmatprep.subr.mxu0 0.0
    %1749 = vmatpush1.msra.mxu0 0.0
    %1750 = vmatprep.subr.mxu0 0.0
    %1751 = vmatpush1.msra.mxu0 0.0
    %1752 = vmatprep.subr.mxu0 0.0
    %1753 = vmatpush1.msra.mxu0 0.0
    %1754 = vmatprep.subr.mxu0 0.0
    %1755 = vmatpush1.msra.mxu0 0.0
    %1756 = vmatprep.subr.mxu0 0.0
    %1757 = vmatpush1.msra.mxu0 0.0
    %1758 = vmatprep.subr.mxu0 0.0
    %1759 = vmatpush1.msra.mxu0 0.0
    %1760 = vmatprep.subr.mxu0 0.0
    %1761 = vmatpush1.msra.mxu0 0.0
    %1762 = vmatprep.subr.mxu0 0.0
    %1763 = vmatpush1.msra.mxu0 0.0
    %1764 = vmatprep.subr.mxu0 0.0
    %1765 = vmatpush1.msra.mxu0 0.0
    %1766 = vmatprep.subr.mxu0 0.0
    %1767 = vmatpush1.msra.mxu0 0.0
    %1768 = vmatprep.subr.mxu0 0.0
    %1769 = vmatpush1.msra.mxu0 0.0
    %1770 = vmatprep.subr.mxu0 0.0
    %1771 = vmatpush1.msra.mxu0 0.0
    %1772 = vmatprep.subr.mxu0 0.0
    %1773 = vmatpush1.msra.mxu0 0.0
    %1774 = vmatprep.subr.mxu0 0.0
    %1775 = vmatpush1.msra.mxu0 0.0
    %1776 = vmatprep.subr.mxu0 0.0
    %1777 = vmatpush1.msra.mxu0 0.0
    %1778 = vmatprep.subr.mxu0 0.0
    %1779 = vmatpush1.msra.mxu0 0.0
    %1780 = vmatprep.subr.mxu0 0.0
    %1781 = vmatpush1.msra.mxu0 0.0
    %1782 = vmatprep.subr.mxu0 0.0
    %1783 = vmatpush1.msra.mxu0 0.0
    %1784 = vmatprep.subr.mxu0 0.0
    %1785 = vmatpush1.msra.mxu0 0.0
    %1786 = vmatprep.subr.mxu0 0.0
    %1787 = vmatpush1.msra.mxu0 0.0
    %1788 = vmatprep.subr.mxu0 0.0
    %1789 = vmatpush1.msra.mxu0 0.0
    %1790 = vmatprep.mubr.f32.mxu0 0.0
    %1791 = vmatmul.mubr.f32.gmra.mrb[0].mxu0 %v1724
    %v1792 = vpop.f32.mrb[0].mxu0
    %v1793 = vadd.f32 0.0, %v1792
    %v1794 = vpop.f32.mrb[0].mxu0
    %1795 = vdwg.mxu0
    %s1796 = scalar_lea.vmem %s7, 8
    %v1797 = vld [vmem:[%s1796] sm:$0xff]
    %v1799 = vsel %vm150, %v1797, 0
    %1801 = vmatprep.subr.mxu0 0.0
    %1802 = vmatpush1.msra.mxu0 %v1718
    %1803 = vmatprep.subr.mxu0 0.0
    %1804 = vmatpush1.msra.mxu0 %v1719
    %1805 = vmatprep.subr.mxu0 0.0
    %1806 = vmatpush1.msra.mxu0 %v1720
    %1807 = vmatprep.subr.mxu0 0.0
    %1808 = vmatpush1.msra.mxu0 %v1721
    %1809 = vmatprep.subr.mxu0 0.0
    %1810 = vmatpush1.msra.mxu0 0.0
    %1811 = vmatprep.subr.mxu0 0.0
    %1812 = vmatpush1.msra.mxu0 0.0
    %1813 = vmatprep.subr.mxu0 0.0
    %1814 = vmatpush1.msra.mxu0 0.0
    %1815 = vmatprep.subr.mxu0 0.0
    %1816 = vmatpush1.msra.mxu0 0.0
    %1817 = vmatprep.subr.mxu0 0.0
    %1818 = vmatpush1.msra.mxu0 0.0
    %1819 = vmatprep.subr.mxu0 0.0
    %1820 = vmatpush1.msra.mxu0 0.0
    %1821 = vmatprep.subr.mxu0 0.0
    %1822 = vmatpush1.msra.mxu0 0.0
    %1823 = vmatprep.subr.mxu0 0.0
    %1824 = vmatpush1.msra.mxu0 0.0
    %1825 = vmatprep.subr.mxu0 0.0
    %1826 = vmatpush1.msra.mxu0 0.0
    %1827 = vmatprep.subr.mxu0 0.0
    %1828 = vmatpush1.msra.mxu0 0.0
    %1829 = vmatprep.subr.mxu0 0.0
    %1830 = vmatpush1.msra.mxu0 0.0
    %1831 = vmatprep.subr.mxu0 0.0
    %1832 = vmatpush1.msra.mxu0 0.0
    %1833 = vmatprep.subr.mxu0 0.0
    %1834 = vmatpush1.msra.mxu0 0.0
    %1835 = vmatprep.subr.mxu0 0.0
    %1836 = vmatpush1.msra.mxu0 0.0
    %1837 = vmatprep.subr.mxu0 0.0
    %1838 = vmatpush1.msra.mxu0 0.0
    %1839 = vmatprep.subr.mxu0 0.0
    %1840 = vmatpush1.msra.mxu0 0.0
    %1841 = vmatprep.subr.mxu0 0.0
    %1842 = vmatpush1.msra.mxu0 0.0
    %1843 = vmatprep.subr.mxu0 0.0
    %1844 = vmatpush1.msra.mxu0 0.0
    %1845 = vmatprep.subr.mxu0 0.0
    %1846 = vmatpush1.msra.mxu0 0.0
    %1847 = vmatprep.subr.mxu0 0.0
    %1848 = vmatpush1.msra.mxu0 0.0
    %1849 = vmatprep.subr.mxu0 0.0
    %1850 = vmatpush1.msra.mxu0 0.0
    %1851 = vmatprep.subr.mxu0 0.0
    %1852 = vmatpush1.msra.mxu0 0.0
    %1853 = vmatprep.subr.mxu0 0.0
    %1854 = vmatpush1.msra.mxu0 0.0
    %1855 = vmatprep.subr.mxu0 0.0
    %1856 = vmatpush1.msra.mxu0 0.0
    %1857 = vmatprep.subr.mxu0 0.0
    %1858 = vmatpush1.msra.mxu0 0.0
    %1859 = vmatprep.subr.mxu0 0.0
    %1860 = vmatpush1.msra.mxu0 0.0
    %1861 = vmatprep.subr.mxu0 0.0
    %1862 = vmatpush1.msra.mxu0 0.0
    %1863 = vmatprep.subr.mxu0 0.0
    %1864 = vmatpush1.msra.mxu0 0.0
    %1865 = vmatprep.mubr.f32.mxu0 0.0
    %1866 = vmatmul.mubr.f32.gmra.mrb[0].mxu0 %v1799
    %v1867 = vpop.f32.mrb[0].mxu0
    %v1868 = vadd.f32 0.0, %v1867
    %v1869 = vpop.f32.mrb[0].mxu0
    %1870 = vdwg.mxu0
    %v1871 = vlaneseq
    %v1872 = vand.u32 %v1871, 127
    %vm1873 = vcmp.lt.s32.totalorder %v1872, 64
    %v1874 = vsel %vm1873, %v1793, %v1868
    %1875 = vst [vmem:[#allocation13] sm:$0xff] %v1874
    // Predicated region
    $region58: #{tpu_custom_call.1} parent=1 // pred_check
      _
    $region59: #{tpu_custom_call.1} parent=1 // pred_check_branch
      %1877 = sbr.rel (0) target = $region61
    $region60: #{tpu_custom_call.1} parent=1 // pred_region
      %s1879 = ssub.s32 128, 128
      %1880 = vsyncadd [#allocation4], %s1879
      %s1882 = sshll.u32 [#allocation13], 4
      %s1883 = int_to_ptr.vmem [resolvable:$true] %s1882
      %1885 = dma.vmem_to_hbm [thread:$0]  %s1883, 128, %s8, [#allocation4]
    $region61: #{tpu_custom_call.1} parent=1 // pred_fallthru
      _
    // Predicated region
    $region62: #{tpu_custom_call.1} parent=1 // pred_check
      _
    $region63: #{tpu_custom_call.1} parent=1 // pred_check_branch
      %1887 = sbr.rel (0) target = $region65
    $region64: #{tpu_custom_call.1} parent=1 // pred_region
      %s1889 = ssub.s32 512, 512
      %1890 = vsyncadd [#allocation15], %s1889
      %s1891 = sshll.u32 [#allocation14], 4
      %s1892 = int_to_ptr.vmem [resolvable:$true] %s1891
      %1897 = dma.vmem_to_hbm [thread:$0]  %s1892, 512, %s9, [#allocation15], 128, 128, 8
    $region65: #{tpu_custom_call.1} parent=1 // pred_fallthru
      _
    // Predicated region
    $region66: #{tpu_custom_call.1} parent=1 // pred_check
      _
    $region67: #{tpu_custom_call.1} parent=1 // pred_check_branch
      %1899 = sbr.rel (0) target = $region69
    $region68: #{tpu_custom_call.1} parent=1 // pred_region
      %1900 = dma.done [#allocation4], 128
    $region69: #{tpu_custom_call.1} parent=1 // pred_fallthru
      _
    // Predicated region
    $region70: #{tpu_custom_call.1} parent=1 // pred_check
      _
    $region71: #{tpu_custom_call.1} parent=1 // pred_check_branch
      %1902 = sbr.rel (0) target = $region73
    $region72: #{tpu_custom_call.1} parent=1 // pred_region
      %1903 = dma.done [#allocation15], 512
    $region73: #{tpu_custom_call.1} parent=1 // pred_fallthru
      _
    %1904 = vsyncpa [#allocation3], 1
    %1905 = vsyncpa [#allocation6], 1
    %1906 = vsyncpa [#allocation9], 1
    %1907 = vsyncpa [#allocation12], 1
    %1908 = vsyncpa [#allocation4], 1
    %1909 = vsyncpa [#allocation15], 1

</llo_original>
